<compile_context>
chip_gen: v6e
topology: v6e:2x2x1
jax: 0.10.0
libtpu: 0.0.40
codegen_flags: <defaults>
</compile_context>

<pallas_src>
import math

import jax
import jax.numpy as jnp
from jax.experimental import pallas as pl
from jax.experimental.pallas import tpu as pltpu


# ----------------------------- kernel body ---------------------------------

def _fc_decoder_kernel(x_ref, w1_ref, b1_ref, w2_ref, b2_ref, w3_ref, b3_ref,
                       pcs_ref, code_ref, acc_ref):
    """Fused 3-layer MLP with a K-tiled first matmul.

    grid = (batch_tiles, k_tiles); all matmuls accumulate in f32 on the MXU.
    """
    k = pl.program_id(1)

    @pl.when(k == 0)
    def _():
        acc_ref[...] = jnp.zeros_like(acc_ref)

    # code_gen layer-1 partial product for this K slice (bf16 x bf16 -> f32 acc).
    acc_ref[...] += jnp.dot(x_ref[...], w1_ref[...],
                            preferred_element_type=jnp.float32)

    @pl.when(k == pl.num_programs(1) - 1)
    def _():
        # code_gen epilogue: f32 bias + ReLU.
        code = jnp.maximum(acc_ref[...] + b1_ref[...], 0.0)
        code_ref[...] = code.astype(code_ref.dtype)

        # pc_gen hidden layer: Linear + ReLU (f32 accumulation).
        h = jnp.dot(code.astype(w2_ref.dtype), w2_ref[...],
                    preferred_element_type=jnp.float32)
        h = jnp.maximum(h + b2_ref[...], 0.0)

        # pc_gen output layer: Linear, no activation.
        out = jnp.dot(h.astype(w3_ref.dtype), w3_ref[...],
                      preferred_element_type=jnp.float32)
        pcs_ref[...] = (out + b3_ref[...]).astype(pcs_ref.dtype)


# ----------------------------- helpers --------------------------------------

def _round_up(n, m):
    return ((n + m - 1) // m) * m


def _cdiv(a, b):
    return -(-a // b)


def _pad_axis(a, axis, target):
    pad = target - a.shape[axis]
    if pad == 0:
        return a
    widths = [(0, 0)] * a.ndim
    widths[axis] = (0, pad)
    return jnp.pad(a, widths)


def _bspec(shape, index_map, nbuf=None):
    """BlockSpec with an optional explicit buffer count (graceful fallback)."""
    if nbuf is None:
        return pl.BlockSpec(shape, index_map)
    try:
        return pl.BlockSpec(shape, index_map, pipeline_mode=pl.Buffered(nbuf))
    except (TypeError, AttributeError):
        return pl.BlockSpec(shape, index_map)


def _vmem_needed(tile_m, tile_k, kt, hid_pad, out_pad, wsz, asz, osz):
    resident = (hid_pad * hid_pad + hid_pad * out_pad) * wsz   # W2, W3 (1 buffer)
    resident += (2 * hid_pad + out_pad) * 4                    # f32 biases
    w1 = tile_k * hid_pad * wsz * (1 if kt == 1 else 2)        # resident vs streamed
    x = tile_m * tile_k * asz * 2                              # double-buffered x tile
    outs = tile_m * (hid_pad + out_pad) * osz * 2              # code + pcs out tiles
    acc = tile_m * hid_pad * 4                                 # f32 accumulator scratch
    return resident + w1 + x + outs + acc


# ----------------------------- host wrapper ---------------------------------

def fc_decoder_forward(encodings, params, n_points, *,
                       compute_dtype=jnp.bfloat16, tile_m=None):
    """params: dict with w1,b1,w2,b2,w3,b3 (weights stored as (in, out))."""
    feat = encodings[-2]                       # NCHW feature map
    B = feat.shape[0]
    x = feat.reshape(B, -1)                    # vec(): flatten per batch (row-major)
    out_dtype = x.dtype

    w1, b1 = params["w1"], params["b1"]
    w2, b2 = params["w2"], params["b2"]
    w3, b3 = params["w3"], params["b3"]
    in_dim, hidden = w1.shape
    out_dim = w3.shape[1]

    # ---- generation-aware VMEM budget & default batch tile ----
    try:
        phys_vmem = int(pltpu.get_tpu_info().vmem_capacity_bytes)
    except Exception:
        phys_vmem = 64 << 20                   # conservative (v7x per-TC)
    vmem_cap = int(phys_vmem * 0.8)            # headroom for Mosaic scratch / sems
    if tile_m is None:
        tile_m = 512 if phys_vmem >= (96 << 20) else 256   # v5e/v6e vs v7x

    # ---- padding targets (zero padding; results unchanged) ----
    tile_m = max(8, (min(tile_m, _round_up(B, 8)) // 8) * 8)
    in_pad = _round_up(in_dim, 128)
    hid_pad = _round_up(hidden, 128)
    out_pad = _round_up(out_dim, 128)          # lane-dense final store

    # v7x has 2 TensorCores: keep >=2 "parallel" batch steps when it does not
    # shrink tiles below 128 rows (harmless on single-TC v5e/v6e).
    if _round_up(B, tile_m) == tile_m and tile_m >= 256 and (tile_m // 2) % 8 == 0:
        tile_m //= 2

    wsz = jnp.dtype(compute_dtype).itemsize
    osz = jnp.dtype(out_dtype).itemsize

    # ---- K-tiling of layer 1: shrink tile_k (then tile_m) until VMEM fits ----
    kt, tile_k = 1, in_pad
    for _ in range(64):
        if _vmem_needed(tile_m, tile_k, kt, hid_pad, out_pad, wsz, wsz, osz) <= vmem_cap:
            break
        if tile_k > 128:
            kt *= 2
            tile_k = _round_up(_cdiv(in_pad, kt), 128)
        elif tile_m > 8:
            tile_m = max(8, ((tile_m // 2) // 8) * 8)
        else:
            break  # TODO(synk): also tile hidden/output N dims if even this overflows
    in_pad = tile_k * kt
    b_pad = _round_up(B, tile_m)

    # ---- pad + cast matmul operands (bf16); biases stay f32 ----
    xp = _pad_axis(_pad_axis(x, 0, b_pad), 1, in_pad).astype(compute_dtype)
    w1p = _pad_axis(_pad_axis(w1, 0, in_pad), 1, hid_pad).astype(compute_dtype)
    w2p = _pad_axis(_pad_axis(w2, 0, hid_pad), 1, hid_pad).astype(compute_dtype)
    w3p = _pad_axis(_pad_axis(w3, 0, hid_pad), 1, out_pad).astype(compute_dtype)
    b1p = _pad_axis(b1, 1, hid_pad).astype(jnp.float32)
    b2p = _pad_axis(b2, 1, hid_pad).astype(jnp.float32)
    b3p = _pad_axis(b3, 1, out_pad).astype(jnp.float32)

    grid = (b_pad // tile_m, kt)

    vmem_need = _vmem_needed(tile_m, tile_k, kt, hid_pad, out_pad, wsz, wsz, osz)
    vmem_limit = int(min(vmem_cap, max(vmem_need + (8 << 20), 16 << 20)))

    flops = 2 * b_pad * (in_pad * hid_pad + hid_pad * hid_pad + hid_pad * out_pad)
    bytes_accessed = (xp.size * wsz + (w1p.size + w2p.size + w3p.size) * wsz
                      + (b1p.size + b2p.size + b3p.size) * 4
                      + b_pad * (hid_pad + out_pad) * osz)

    def _run(weight_bufs):
        # x (and W1 when K-tiled) stream over the grid; W2, W3 and all biases
        # are VMEM-resident with a constant index_map (single-buffered).
        w1_bufs = weight_bufs if kt == 1 else None   # streamed W1 keeps 2 buffers
        in_specs = [
            _bspec((tile_m, tile_k), lambda i, k: (i, k)),                 # x tile
            _bspec((tile_k, hid_pad), lambda i, k: (k, 0), w1_bufs),       # W1
            _bspec((1, hid_pad), lambda i, k: (0, 0), weight_bufs),        # b1 (f32)
            _bspec((hid_pad, hid_pad), lambda i, k: (0, 0), weight_bufs),  # W2
            _bspec((1, hid_pad), lambda i, k: (0, 0), weight_bufs),        # b2 (f32)
            _bspec((hid_pad, out_pad), lambda i, k: (0, 0), weight_bufs),  # W3
            _bspec((1, out_pad), lambda i, k: (0, 0), weight_bufs),        # b3 (f32)
        ]
        out_specs = (
            pl.BlockSpec((tile_m, out_pad), lambda i, k: (i, 0)),          # pcs tile
            pl.BlockSpec((tile_m, hid_pad), lambda i, k: (i, 0)),          # code tile
        )
        return pl.pallas_call(
            _fc_decoder_kernel,
            out_shape=(
                jax.ShapeDtypeStruct((b_pad, out_pad), out_dtype),
                jax.ShapeDtypeStruct((b_pad, hid_pad), out_dtype),
            ),
            grid=grid,
            in_specs=in_specs,
            out_specs=out_specs,
            scratch_shapes=[pltpu.VMEM((tile_m, hid_pad), jnp.float32)],
            compiler_params=pltpu.CompilerParams(
                dimension_semantics=("parallel", "arbitrary"),
                vmem_limit_bytes=vmem_limit,
            ),
            cost_estimate=pl.CostEstimate(
                flops=flops, transcendentals=0, bytes_accessed=int(bytes_accessed)),
        )(xp, w1p, b1p, w2p, b2p, w3p, b3p)

    try:
        pcs_flat, code_full = _run(1)      # single-buffer the constant operands
    except Exception:
        pcs_flat, code_full = _run(None)   # fall back to default double-buffering

    # strip batch / lane padding
    pcs = pcs_flat[:B, :out_dim].reshape(-1, n_points, 3)   # .view(-1, n_points, 3)
    code = code_full[:B, :hidden]
    return pcs, code


# ----------------------------- params / reference ---------------------------

def init_params(key, in_features, hidden, out_features, dtype=jnp.float32):
    """Deterministic synthetic parameters (shapes match the nn.Linear layers)."""
    ks = jax.random.split(key, 6)

    def lin(kw, fan_in, fan_out):
        scale = 1.0 / math.sqrt(fan_in)
        # stored as (in, out)  (== torch weight.T)
        return jax.random.uniform(kw, (fan_in, fan_out), dtype, -scale, scale)

    return {
        "w1": lin(ks[0], in_features, hidden),
        "b1": jax.random.uniform(ks[1], (1, hidden), dtype, -0.01, 0.01),
        "w2": lin(ks[2], hidden, hidden),
        "b2": jax.random.uniform(ks[3], (1, hidden), dtype, -0.01, 0.01),
        "w3": lin(ks[4], hidden, out_features),
        "b3": jax.random.uniform(ks[5], (1, out_features), dtype, -0.01, 0.01),
    }


def reference_forward(encodings, params, n_points, compute_dtype=jnp.float32):
    """Pure-JAX reference; compute_dtype mirrors the kernel's matmul-input cast."""
    x = encodings[-2].reshape(encodings[-2].shape[0], -1)
    cd = compute_dtype
    code = jnp.maximum(
        jnp.dot(x.astype(cd), params["w1"].astype(cd),
                preferred_element_type=jnp.float32) + params["b1"], 0.0)
    h = jnp.maximum(
        jnp.dot(code.astype(cd), params["w2"].astype(cd),
                preferred_element_type=jnp.float32) + params["b2"], 0.0)
    pcs = jnp.dot(h.astype(cd), params["w3"].astype(cd),
                  preferred_element_type=jnp.float32) + params["b3"]
    return pcs.reshape(-1, n_points, 3), code


# ----------------------------- demo / check ---------------------------------

if __name__ == "__main__":
    # Small shapes consistent with the module structure (defaults scaled down):
    #   code_gen: MLP(input=C*H*W, hidden=H_DIM, hidden_layers=1, output=None)
    #   pc_gen  : MLP(input=H_DIM, hidden=H_DIM, hidden_layers=1, output=3*N_POINTS)
    B, C, H, W = 2, 32, 4, 4          # encodings[-2] is (B, C, H, W) NCHW
    IN_FEATURES = C * H * W           # 512
    H_DIM = 128
    N_POINTS = 64
    OUT_FEATURES = 3 * N_POINTS       # 192 (lane-padded to 256 inside the kernel)

    key = jax.random.PRNGKey(0)
    k_feat_prev, k_feat_last, k_params = jax.random.split(key, 3)

    # encodings is a list of feature maps; forward only uses encodings[-2]
    encodings = [
        jax.random.normal(k_feat_prev, (B, C, H, W), jnp.float32),             # [-2] used
        jax.random.normal(k_feat_last, (B, C, H // 2, W // 2), jnp.float32),   # [-1] unused
    ]
    params = init_params(k_params, IN_FEATURES, H_DIM, OUT_FEATURES)

    pcs, code = fc_decoder_forward(encodings, params, N_POINTS,
                                   compute_dtype=jnp.bfloat16)
    jax.block_until_ready((pcs, code))

    assert pcs.shape == (B, N_POINTS, 3)
    assert code.shape == (B, H_DIM)

    # Exact-semantics check: reference with the same bf16 matmul-input rounding.
    pcs_ref, code_ref = reference_forward(encodings, params, N_POINTS,
                                          compute_dtype=jnp.bfloat16)
    assert jnp.allclose(pcs, pcs_ref, atol=5e-3, rtol=5e-3)
    assert jnp.allclose(code, code_ref, atol=5e-3, rtol=5e-3)

    # Sanity check against the full-f32 module semantics (bf16 rounding tolerance).
    pcs_f32, code_f32 = reference_forward(encodings, params, N_POINTS)
    assert jnp.allclose(pcs, pcs_f32, atol=1e-1, rtol=1e-1)
    assert jnp.allclose(code, code_f32, atol=1e-1, rtol=1e-1)

    print("KERNEL_OK")
</pallas_src>

<mosaic_0001>
module attributes {stable_mosaic.version = 11 : i64} {
  func.func @_fc_decoder_kernel(%arg0: i32, %arg1: i32, %arg2: memref<8x512xbf16, #tpu.memory_space<vmem>>, %arg3: memref<512x128xbf16, #tpu.memory_space<vmem>>, %arg4: memref<1x128xf32, #tpu.memory_space<vmem>>, %arg5: memref<128x128xbf16, #tpu.memory_space<vmem>>, %arg6: memref<1x128xf32, #tpu.memory_space<vmem>>, %arg7: memref<128x256xbf16, #tpu.memory_space<vmem>>, %arg8: memref<1x256xf32, #tpu.memory_space<vmem>>, %arg9: memref<8x256xf32, #tpu.memory_space<vmem>>, %arg10: memref<8x128xf32, #tpu.memory_space<vmem>>, %arg11: memref<8x128xf32, #tpu.memory_space<vmem>>) attributes {dimension_semantics = [#tpu.dimension_semantics<parallel>, #tpu.dimension_semantics<arbitrary>], iteration_bounds = array<i64: 1, 1>, scalar_prefetch = 0 : i64, scratch_operands = 1 : i64, tpu.core_type = #tpu.core_type<tc>, window_params = [{transform_indices = @transform_0, window_bounds = array<i64: 8, 512>}, {pipeline_mode = #tpu.pipeline_mode<synchronous>, transform_indices = @transform_1, window_bounds = array<i64: 512, 128>}, {pipeline_mode = #tpu.pipeline_mode<synchronous>, transform_indices = @transform_2, window_bounds = array<i64: 1, 128>}, {pipeline_mode = #tpu.pipeline_mode<synchronous>, transform_indices = @transform_3, window_bounds = array<i64: 128, 128>}, {pipeline_mode = #tpu.pipeline_mode<synchronous>, transform_indices = @transform_4, window_bounds = array<i64: 1, 128>}, {pipeline_mode = #tpu.pipeline_mode<synchronous>, transform_indices = @transform_5, window_bounds = array<i64: 128, 256>}, {pipeline_mode = #tpu.pipeline_mode<synchronous>, transform_indices = @transform_6, window_bounds = array<i64: 1, 256>}, {transform_indices = @transform_7, window_bounds = array<i64: 8, 256>}, {transform_indices = @transform_8, window_bounds = array<i64: 8, 128>}]} {
    %c0_i32 = arith.constant 0 : i32
    %0 = arith.cmpi eq, %arg1, %c0_i32 : i32
    %1 = arith.extui %0 : i1 to i32
    %c0_i32_0 = arith.constant 0 : i32
    %2 = arith.cmpi ne, %1, %c0_i32_0 : i32
    scf.if %2 {
      %cst_10 = arith.constant 0.000000e+00 : f32
      %12 = vector.broadcast %cst_10 : f32 to vector<8x128xf32>
      %c0_11 = arith.constant 0 : index
      %c0_12 = arith.constant 0 : index
      %13 = vector.load %arg11[%c0_11, %c0_12] : memref<8x128xf32, #tpu.memory_space<vmem>>, vector<8x128xf32>
      tpu.vector_store %arg11[%c0_11, %c0_12], %12 {strides = array<i32>} : memref<8x128xf32, #tpu.memory_space<vmem>>, vector<8x128xf32>,
    } else {
    }
    %c0 = arith.constant 0 : index
    %c0_1 = arith.constant 0 : index
    %3 = vector.load %arg11[%c0, %c0_1] : memref<8x128xf32, #tpu.memory_space<vmem>>, vector<8x128xf32>
    %c0_2 = arith.constant 0 : index
    %c0_3 = arith.constant 0 : index
    %4 = vector.load %arg2[%c0_2, %c0_3] : memref<8x512xbf16, #tpu.memory_space<vmem>>, vector<8x512xbf16>
    %c0_4 = arith.constant 0 : index
    %c0_5 = arith.constant 0 : index
    %5 = vector.load %arg3[%c0_4, %c0_5] : memref<512x128xbf16, #tpu.memory_space<vmem>>, vector<512x128xbf16>
    %cst = arith.constant dense<0.000000e+00> : vector<8x128xf32>
    %6 = tpu.matmul %4, %5, %cst {dimension_numbers = #tpu.dot_dimension_numbers<[1], [0], [0], [1], [0, 0, 1, 1], [], []>} : vector<8x512xbf16>, vector<512x128xbf16>, vector<8x128xf32> -> vector<8x128xf32>
    %7 = arith.addf %3, %6 : vector<8x128xf32>
    %c0_6 = arith.constant 0 : index
    %c0_7 = arith.constant 0 : index
    %8 = vector.load %arg11[%c0_6, %c0_7] : memref<8x128xf32, #tpu.memory_space<vmem>>, vector<8x128xf32>
    tpu.vector_store %arg11[%c0_6, %c0_7], %7 {strides = array<i32>} : memref<8x128xf32, #tpu.memory_space<vmem>>, vector<8x128xf32>,
    %c0_i32_8 = arith.constant 0 : i32
    %9 = arith.cmpi eq, %arg1, %c0_i32_8 : i32
    %10 = arith.extui %9 : i1 to i32
    %c0_i32_9 = arith.constant 0 : i32
    %11 = arith.cmpi ne, %10, %c0_i32_9 : i32
    scf.if %11 {
      %c0_10 = arith.constant 0 : index
      %c0_11 = arith.constant 0 : index
      %12 = vector.load %arg11[%c0_10, %c0_11] : memref<8x128xf32, #tpu.memory_space<vmem>>, vector<8x128xf32>
      %c0_12 = arith.constant 0 : index
      %c0_13 = arith.constant 0 : index
      %13 = vector.load %arg4[%c0_12, %c0_13] : memref<1x128xf32, #tpu.memory_space<vmem>>, vector<1x128xf32>
      %14 = vector.broadcast %13 : vector<1x128xf32> to vector<8x128xf32>
      %15 = arith.addf %12, %14 : vector<8x128xf32>
      %cst_14 = arith.constant 0.000000e+00 : f32
      %16 = vector.broadcast %cst_14 : f32 to vector<8x128xf32>
      %17 = arith.maximumf %15, %16 : vector<8x128xf32>
      %c0_15 = arith.constant 0 : index
      %c0_16 = arith.constant 0 : index
      %18 = vector.load %arg10[%c0_15, %c0_16] : memref<8x128xf32, #tpu.memory_space<vmem>>, vector<8x128xf32>
      tpu.vector_store %arg10[%c0_15, %c0_16], %17 {strides = array<i32>} : memref<8x128xf32, #tpu.memory_space<vmem>>, vector<8x128xf32>,
      %19 = arith.truncf %17 : vector<8x128xf32> to vector<8x128xbf16>
      %c0_17 = arith.constant 0 : index
      %c0_18 = arith.constant 0 : index
      %20 = vector.load %arg5[%c0_17, %c0_18] : memref<128x128xbf16, #tpu.memory_space<vmem>>, vector<128x128xbf16>
      %cst_19 = arith.constant dense<0.000000e+00> : vector<8x128xf32>
      %21 = tpu.matmul %19, %20, %cst_19 {dimension_numbers = #tpu.dot_dimension_numbers<[1], [0], [0], [1], [0, 0, 1, 1], [], []>} : vector<8x128xbf16>, vector<128x128xbf16>, vector<8x128xf32> -> vector<8x128xf32>
      %c0_20 = arith.constant 0 : index
      %c0_21 = arith.constant 0 : index
      %22 = vector.load %arg6[%c0_20, %c0_21] : memref<1x128xf32, #tpu.memory_space<vmem>>, vector<1x128xf32>
      %23 = vector.broadcast %22 : vector<1x128xf32> to vector<8x128xf32>
      %24 = arith.addf %21, %23 : vector<8x128xf32>
      %cst_22 = arith.constant 0.000000e+00 : f32
      %25 = vector.broadcast %cst_22 : f32 to vector<8x128xf32>
      %26 = arith.maximumf %24, %25 : vector<8x128xf32>
      %27 = arith.truncf %26 : vector<8x128xf32> to vector<8x128xbf16>
      %c0_23 = arith.constant 0 : index
      %c0_24 = arith.constant 0 : index
      %28 = vector.load %arg7[%c0_23, %c0_24] : memref<128x256xbf16, #tpu.memory_space<vmem>>, vector<128x256xbf16>
      %cst_25 = arith.constant dense<0.000000e+00> : vector<8x256xf32>
      %29 = tpu.matmul %27, %28, %cst_25 {dimension_numbers = #tpu.dot_dimension_numbers<[1], [0], [0], [1], [0, 0, 1, 1], [], []>} : vector<8x128xbf16>, vector<128x256xbf16>, vector<8x256xf32> -> vector<8x256xf32>
      %c0_26 = arith.constant 0 : index
      %c0_27 = arith.constant 0 : index
      %30 = vector.load %arg8[%c0_26, %c0_27] : memref<1x256xf32, #tpu.memory_space<vmem>>, vector<1x256xf32>
      %31 = vector.broadcast %30 : vector<1x256xf32> to vector<8x256xf32>
      %32 = arith.addf %29, %31 : vector<8x256xf32>
      %c0_28 = arith.constant 0 : index
      %c0_29 = arith.constant 0 : index
      %33 = vector.load %arg9[%c0_28, %c0_29] : memref<8x256xf32, #tpu.memory_space<vmem>>, vector<8x256xf32>
      tpu.vector_store %arg9[%c0_28, %c0_29], %32 {strides = array<i32>} : memref<8x256xf32, #tpu.memory_space<vmem>>, vector<8x256xf32>,
    } else {
    }
    return
  }
  func.func @transform_0(%arg0: i32, %arg1: i32) -> (i32, i32) {
    %c0_i32 = arith.constant 0 : i32
    return %arg0, %arg1 : i32, i32
  }
  func.func @transform_1(%arg0: i32, %arg1: i32) -> (i32, i32) {
    %c0_i32 = arith.constant 0 : i32
    %c0_i32_0 = arith.constant 0 : i32
    return %arg1, %c0_i32 : i32, i32
  }
  func.func @transform_2(%arg0: i32, %arg1: i32) -> (i32, i32) {
    %c0_i32 = arith.constant 0 : i32
    %c0_i32_0 = arith.constant 0 : i32
    %c0_i32_1 = arith.constant 0 : i32
    return %c0_i32, %c0_i32_0 : i32, i32
  }
  func.func @transform_3(%arg0: i32, %arg1: i32) -> (i32, i32) {
    %c0_i32 = arith.constant 0 : i32
    %c0_i32_0 = arith.constant 0 : i32
    %c0_i32_1 = arith.constant 0 : i32
    return %c0_i32, %c0_i32_0 : i32, i32
  }
  func.func @transform_4(%arg0: i32, %arg1: i32) -> (i32, i32) {
    %c0_i32 = arith.constant 0 : i32
    %c0_i32_0 = arith.constant 0 : i32
    %c0_i32_1 = arith.constant 0 : i32
    return %c0_i32, %c0_i32_0 : i32, i32
  }
  func.func @transform_5(%arg0: i32, %arg1: i32) -> (i32, i32) {
    %c0_i32 = arith.constant 0 : i32
    %c0_i32_0 = arith.constant 0 : i32
    %c0_i32_1 = arith.constant 0 : i32
    return %c0_i32, %c0_i32_0 : i32, i32
  }
  func.func @transform_6(%arg0: i32, %arg1: i32) -> (i32, i32) {
    %c0_i32 = arith.constant 0 : i32
    %c0_i32_0 = arith.constant 0 : i32
    %c0_i32_1 = arith.constant 0 : i32
    return %c0_i32, %c0_i32_0 : i32, i32
  }
  func.func @transform_7(%arg0: i32, %arg1: i32) -> (i32, i32) {
    %c0_i32 = arith.constant 0 : i32
    %c0_i32_0 = arith.constant 0 : i32
    return %arg0, %c0_i32 : i32, i32
  }
  func.func @transform_8(%arg0: i32, %arg1: i32) -> (i32, i32) {
    %c0_i32 = arith.constant 0 : i32
    %c0_i32_0 = arith.constant 0 : i32
    return %arg0, %c0_i32 : i32, i32
  }
}

module attributes {stable_mosaic.version = 11 : i64} {
  func.func @_fc_decoder_kernel(%arg0: i32, %arg1: i32, %arg2: memref<8x512xbf16, #tpu.memory_space<vmem>>, %arg3: memref<512x128xbf16, #tpu.memory_space<vmem>>, %arg4: memref<1x128xf32, #tpu.memory_space<vmem>>, %arg5: memref<128x128xbf16, #tpu.memory_space<vmem>>, %arg6: memref<1x128xf32, #tpu.memory_space<vmem>>, %arg7: memref<128x256xbf16, #tpu.memory_space<vmem>>, %arg8: memref<1x256xf32, #tpu.memory_space<vmem>>, %arg9: memref<8x256xf32, #tpu.memory_space<vmem>>, %arg10: memref<8x128xf32, #tpu.memory_space<vmem>>, %arg11: memref<8x128xf32, #tpu.memory_space<vmem>>) attributes {dimension_semantics = [#tpu.dimension_semantics<parallel>, #tpu.dimension_semantics<arbitrary>], iteration_bounds = array<i64: 1, 1>, scalar_prefetch = 0 : i64, scratch_operands = 1 : i64, tpu.core_type = #tpu.core_type<tc>, window_params = [{transform_indices = @transform_0, window_bounds = array<i64: 8, 512>}, {transform_indices = @transform_1, window_bounds = array<i64: 512, 128>}, {pipeline_mode = #tpu.pipeline_mode<synchronous>, transform_indices = @transform_2, window_bounds = array<i64: 1, 128>}, {pipeline_mode = #tpu.pipeline_mode<synchronous>, transform_indices = @transform_3, window_bounds = array<i64: 128, 128>}, {pipeline_mode = #tpu.pipeline_mode<synchronous>, transform_indices = @transform_4, window_bounds = array<i64: 1, 128>}, {pipeline_mode = #tpu.pipeline_mode<synchronous>, transform_indices = @transform_5, window_bounds = array<i64: 128, 256>}, {pipeline_mode = #tpu.pipeline_mode<synchronous>, transform_indices = @transform_6, window_bounds = array<i64: 1, 256>}, {transform_indices = @transform_7, window_bounds = array<i64: 8, 256>}, {transform_indices = @transform_8, window_bounds = array<i64: 8, 128>}]} {
    %c0_i32 = arith.constant 0 : i32
    %0 = arith.cmpi eq, %arg1, %c0_i32 : i32
    %1 = arith.extui %0 : i1 to i32
    %c0_i32_0 = arith.constant 0 : i32
    %2 = arith.cmpi ne, %1, %c0_i32_0 : i32
    scf.if %2 {
      %cst_10 = arith.constant 0.000000e+00 : f32
      %12 = vector.broadcast %cst_10 : f32 to vector<8x128xf32>
      %c0_11 = arith.constant 0 : index
      %c0_12 = arith.constant 0 : index
      %13 = vector.load %arg11[%c0_11, %c0_12] : memref<8x128xf32, #tpu.memory_space<vmem>>, vector<8x128xf32>
      tpu.vector_store %arg11[%c0_11, %c0_12], %12 {strides = array<i32>} : memref<8x128xf32, #tpu.memory_space<vmem>>, vector<8x128xf32>,
    } else {
    }
    %c0 = arith.constant 0 : index
    %c0_1 = arith.constant 0 : index
    %3 = vector.load %arg11[%c0, %c0_1] : memref<8x128xf32, #tpu.memory_space<vmem>>, vector<8x128xf32>
    %c0_2 = arith.constant 0 : index
    %c0_3 = arith.constant 0 : index
    %4 = vector.load %arg2[%c0_2, %c0_3] : memref<8x512xbf16, #tpu.memory_space<vmem>>, vector<8x512xbf16>
    %c0_4 = arith.constant 0 : index
    %c0_5 = arith.constant 0 : index
    %5 = vector.load %arg3[%c0_4, %c0_5] : memref<512x128xbf16, #tpu.memory_space<vmem>>, vector<512x128xbf16>
    %cst = arith.constant dense<0.000000e+00> : vector<8x128xf32>
    %6 = tpu.matmul %4, %5, %cst {dimension_numbers = #tpu.dot_dimension_numbers<[1], [0], [0], [1], [0, 0, 1, 1], [], []>} : vector<8x512xbf16>, vector<512x128xbf16>, vector<8x128xf32> -> vector<8x128xf32>
    %7 = arith.addf %3, %6 : vector<8x128xf32>
    %c0_6 = arith.constant 0 : index
    %c0_7 = arith.constant 0 : index
    %8 = vector.load %arg11[%c0_6, %c0_7] : memref<8x128xf32, #tpu.memory_space<vmem>>, vector<8x128xf32>
    tpu.vector_store %arg11[%c0_6, %c0_7], %7 {strides = array<i32>} : memref<8x128xf32, #tpu.memory_space<vmem>>, vector<8x128xf32>,
    %c0_i32_8 = arith.constant 0 : i32
    %9 = arith.cmpi eq, %arg1, %c0_i32_8 : i32
    %10 = arith.extui %9 : i1 to i32
    %c0_i32_9 = arith.constant 0 : i32
    %11 = arith.cmpi ne, %10, %c0_i32_9 : i32
    scf.if %11 {
      %c0_10 = arith.constant 0 : index
      %c0_11 = arith.constant 0 : index
      %12 = vector.load %arg11[%c0_10, %c0_11] : memref<8x128xf32, #tpu.memory_space<vmem>>, vector<8x128xf32>
      %c0_12 = arith.constant 0 : index
      %c0_13 = arith.constant 0 : index
      %13 = vector.load %arg4[%c0_12, %c0_13] : memref<1x128xf32, #tpu.memory_space<vmem>>, vector<1x128xf32>
      %14 = vector.broadcast %13 : vector<1x128xf32> to vector<8x128xf32>
      %15 = arith.addf %12, %14 : vector<8x128xf32>
      %cst_14 = arith.constant 0.000000e+00 : f32
      %16 = vector.broadcast %cst_14 : f32 to vector<8x128xf32>
      %17 = arith.maximumf %15, %16 : vector<8x128xf32>
      %c0_15 = arith.constant 0 : index
      %c0_16 = arith.constant 0 : index
      %18 = vector.load %arg10[%c0_15, %c0_16] : memref<8x128xf32, #tpu.memory_space<vmem>>, vector<8x128xf32>
      tpu.vector_store %arg10[%c0_15, %c0_16], %17 {strides = array<i32>} : memref<8x128xf32, #tpu.memory_space<vmem>>, vector<8x128xf32>,
      %19 = arith.truncf %17 : vector<8x128xf32> to vector<8x128xbf16>
      %c0_17 = arith.constant 0 : index
      %c0_18 = arith.constant 0 : index
      %20 = vector.load %arg5[%c0_17, %c0_18] : memref<128x128xbf16, #tpu.memory_space<vmem>>, vector<128x128xbf16>
      %cst_19 = arith.constant dense<0.000000e+00> : vector<8x128xf32>
      %21 = tpu.matmul %19, %20, %cst_19 {dimension_numbers = #tpu.dot_dimension_numbers<[1], [0], [0], [1], [0, 0, 1, 1], [], []>} : vector<8x128xbf16>, vector<128x128xbf16>, vector<8x128xf32> -> vector<8x128xf32>
      %c0_20 = arith.constant 0 : index
      %c0_21 = arith.constant 0 : index
      %22 = vector.load %arg6[%c0_20, %c0_21] : memref<1x128xf32, #tpu.memory_space<vmem>>, vector<1x128xf32>
      %23 = vector.broadcast %22 : vector<1x128xf32> to vector<8x128xf32>
      %24 = arith.addf %21, %23 : vector<8x128xf32>
      %cst_22 = arith.constant 0.000000e+00 : f32
      %25 = vector.broadcast %cst_22 : f32 to vector<8x128xf32>
      %26 = arith.maximumf %24, %25 : vector<8x128xf32>
      %27 = arith.truncf %26 : vector<8x128xf32> to vector<8x128xbf16>
      %c0_23 = arith.constant 0 : index
      %c0_24 = arith.constant 0 : index
      %28 = vector.load %arg7[%c0_23, %c0_24] : memref<128x256xbf16, #tpu.memory_space<vmem>>, vector<128x256xbf16>
      %cst_25 = arith.constant dense<0.000000e+00> : vector<8x256xf32>
      %29 = tpu.matmul %27, %28, %cst_25 {dimension_numbers = #tpu.dot_dimension_numbers<[1], [0], [0], [1], [0, 0, 1, 1], [], []>} : vector<8x128xbf16>, vector<128x256xbf16>, vector<8x256xf32> -> vector<8x256xf32>
      %c0_26 = arith.constant 0 : index
      %c0_27 = arith.constant 0 : index
      %30 = vector.load %arg8[%c0_26, %c0_27] : memref<1x256xf32, #tpu.memory_space<vmem>>, vector<1x256xf32>
      %31 = vector.broadcast %30 : vector<1x256xf32> to vector<8x256xf32>
      %32 = arith.addf %29, %31 : vector<8x256xf32>
      %c0_28 = arith.constant 0 : index
      %c0_29 = arith.constant 0 : index
      %33 = vector.load %arg9[%c0_28, %c0_29] : memref<8x256xf32, #tpu.memory_space<vmem>>, vector<8x256xf32>
      tpu.vector_store %arg9[%c0_28, %c0_29], %32 {strides = array<i32>} : memref<8x256xf32, #tpu.memory_space<vmem>>, vector<8x256xf32>,
    } else {
    }
    return
  }
  func.func @transform_0(%arg0: i32, %arg1: i32) -> (i32, i32) {
    %c0_i32 = arith.constant 0 : i32
    return %arg0, %arg1 : i32, i32
  }
  func.func @transform_1(%arg0: i32, %arg1: i32) -> (i32, i32) {
    %c0_i32 = arith.constant 0 : i32
    %c0_i32_0 = arith.constant 0 : i32
    return %arg1, %c0_i32 : i32, i32
  }
  func.func @transform_2(%arg0: i32, %arg1: i32) -> (i32, i32) {
    %c0_i32 = arith.constant 0 : i32
    %c0_i32_0 = arith.constant 0 : i32
    %c0_i32_1 = arith.constant 0 : i32
    return %c0_i32, %c0_i32_0 : i32, i32
  }
  func.func @transform_3(%arg0: i32, %arg1: i32) -> (i32, i32) {
    %c0_i32 = arith.constant 0 : i32
    %c0_i32_0 = arith.constant 0 : i32
    %c0_i32_1 = arith.constant 0 : i32
    return %c0_i32, %c0_i32_0 : i32, i32
  }
  func.func @transform_4(%arg0: i32, %arg1: i32) -> (i32, i32) {
    %c0_i32 = arith.constant 0 : i32
    %c0_i32_0 = arith.constant 0 : i32
    %c0_i32_1 = arith.constant 0 : i32
    return %c0_i32, %c0_i32_0 : i32, i32
  }
  func.func @transform_5(%arg0: i32, %arg1: i32) -> (i32, i32) {
    %c0_i32 = arith.constant 0 : i32
    %c0_i32_0 = arith.constant 0 : i32
    %c0_i32_1 = arith.constant 0 : i32
    return %c0_i32, %c0_i32_0 : i32, i32
  }
  func.func @transform_6(%arg0: i32, %arg1: i32) -> (i32, i32) {
    %c0_i32 = arith.constant 0 : i32
    %c0_i32_0 = arith.constant 0 : i32
    %c0_i32_1 = arith.constant 0 : i32
    return %c0_i32, %c0_i32_0 : i32, i32
  }
  func.func @transform_7(%arg0: i32, %arg1: i32) -> (i32, i32) {
    %c0_i32 = arith.constant 0 : i32
    %c0_i32_0 = arith.constant 0 : i32
    return %arg0, %c0_i32 : i32, i32
  }
  func.func @transform_8(%arg0: i32, %arg1: i32) -> (i32, i32) {
    %c0_i32 = arith.constant 0 : i32
    %c0_i32_0 = arith.constant 0 : i32
    return %arg0, %c0_i32 : i32, i32
  }
}

</mosaic_0001>

<llo_original>
// kernel: tpu_custom_call.1
$region0: #{tpu_custom_call.1}
  #allocation0 [shape = 'u32[]', space=smem, size = 0x4, offset = 0x4, fixed_abs, tag = 'smem constant byte address 0x4 - core index']
  #allocation1 [shape = 'u32[144,128]{1,0:T(1,128)}', space=vmem, size = 0x12000, scoped, tag = 'internal scratch']
  #allocation2 [shape = 'f32[8,128]{1,0:T(8,128)}', space=vmem, size = 0x1000, scoped, tag = 'scratch operand']
  %s0 = inlined_call_operand.hbm [shape: bf16[8,512], index: 0, kind: input, shape index: {}]
  %s1 = inlined_call_operand.hbm [shape: bf16[512,128], index: 1, kind: input, shape index: {}]
  %s2 = inlined_call_operand.vmem [shape: f32[1,128], index: 2, kind: input, shape index: {}]
  %s3 = inlined_call_operand.hbm [shape: bf16[128,128], index: 3, kind: input, shape index: {}]
  %s4 = inlined_call_operand.vmem [shape: f32[1,128], index: 4, kind: input, shape index: {}]
  %s5 = inlined_call_operand.hbm [shape: bf16[128,256], index: 5, kind: input, shape index: {}]
  %s6 = inlined_call_operand.vmem [shape: f32[1,256], index: 6, kind: input, shape index: {}]
  %s7 = inlined_call_operand.hbm [shape: f32[8,256], index: 7, kind: output, shape index: {0}]
  %s8 = inlined_call_operand.hbm [shape: f32[8,128], index: 8, kind: output, shape index: {1}]
  %9 = xla_tuple %s7, %s8
  %s10 = sld [smem:[#allocation0]]
  $region70: #{tpu_custom_call.1} parent=0
    _
  %s12 = ssub.s32 1, %s10
  %s13 = scalar_select 0, %s12, %s10
  $region1: #{tpu_custom_call.1} parent=0
    #allocation3 [shape = 'u8[8192]{0}', space=vmem, size = 0x2000, scoped, tag = 'input window, operand 0, single buffered']
    #allocation4 [shape = 's32[1]{0}', space=sflag, size = 0x4, scoped, tag = 'scoped memory for tpu_custom_call.1']
    #allocation5 [shape = 's32[1]{0}', space=sflag, size = 0x4, scoped, tag = 'scoped memory for tpu_custom_call.1']
    #allocation6 [shape = 'u8[131072]{0}', space=vmem, size = 0x20000, scoped, tag = 'input window, operand 1, single buffered']
    #allocation7 [shape = 's32[1]{0}', space=sflag, size = 0x4, scoped, tag = 'scoped memory for tpu_custom_call.1']
    #allocation8 [shape = 'u8[32768]{0}', space=vmem, size = 0x8000, scoped, tag = 'input window, operand 3, single buffered']
    #allocation9 [shape = 'u8[65536]{0}', space=vmem, size = 0x10000, scoped, tag = 'input window, operand 5, single buffered']
    #allocation10 [shape = 's32[1]{0}', space=sflag, size = 0x4, scoped, tag = 'scoped memory for tpu_custom_call.1']
    #allocation11 [shape = 'u8[8192]{0}', space=vmem, size = 0x2000, scoped, tag = 'output window, operand 0, single buffered']
    #allocation12 [shape = 'u8[4096]{0}', space=vmem, size = 0x1000, scoped, tag = 'output window, operand 1, single buffered']
    #allocation13 [shape = 's32[1]{0}', space=sflag, size = 0x4, scoped, tag = 'scoped memory for tpu_custom_call.1']
    %14 = vsyncpa [#allocation4], 0
    %15 = vsyncpa [#allocation7], 0
    %16 = vsyncpa [#allocation10], 0
    %17 = vsyncpa [#allocation5], 0
    %18 = vsyncpa [#allocation13], 0
    // Predicated region
    $region2: #{tpu_custom_call.1} parent=1 // pred_check
      _
    $region3: #{tpu_custom_call.1} parent=1 // pred_check_branch
      %20 = sbr.rel (0) target = $region5
    $region4: #{tpu_custom_call.1} parent=1 // pred_region
      %s22 = ssub.s32 256, 256
      %23 = vsyncadd [#allocation4], %s22
      %s25 = sshll.u32 [#allocation3], 4
      %s26 = int_to_ptr.vmem [resolvable:$true] %s25
      %28 = dma.hbm_to_vmem [thread:$0]  %s0, 256, %s26, [#allocation4]
    $region5: #{tpu_custom_call.1} parent=1 // pred_fallthru
      _
    // Predicated region
    $region6: #{tpu_custom_call.1} parent=1 // pred_check
      _
    $region7: #{tpu_custom_call.1} parent=1 // pred_check_branch
      %30 = sbr.rel (0) target = $region9
    $region8: #{tpu_custom_call.1} parent=1 // pred_region
      %s32 = ssub.s32 4096, 4096
      %33 = vsyncadd [#allocation7], %s32
      %s34 = sshll.u32 [#allocation6], 4
      %s35 = int_to_ptr.vmem [resolvable:$true] %s34
      %40 = dma.hbm_to_vmem [thread:$0]  %s1, 4096, %s35, [#allocation7], 64, 64, 4
    $region9: #{tpu_custom_call.1} parent=1 // pred_fallthru
      _
    // Predicated region
    $region10: #{tpu_custom_call.1} parent=1 // pred_check
      _
    $region11: #{tpu_custom_call.1} parent=1 // pred_check_branch
      %42 = sbr.rel (0) target = $region13
    $region12: #{tpu_custom_call.1} parent=1 // pred_region
      _
    $region13: #{tpu_custom_call.1} parent=1 // pred_fallthru
      _
    // Predicated region
    $region14: #{tpu_custom_call.1} parent=1 // pred_check
      _
    $region15: #{tpu_custom_call.1} parent=1 // pred_check_branch
      %44 = sbr.rel (0) target = $region17
    $region16: #{tpu_custom_call.1} parent=1 // pred_region
      %s46 = ssub.s32 1024, 1024
      %47 = vsyncadd [#allocation7], %s46
      %s48 = sshll.u32 [#allocation8], 4
      %s49 = int_to_ptr.vmem [resolvable:$true] %s48
      %54 = dma.hbm_to_vmem [thread:$0]  %s3, 1024, %s49, [#allocation7], 64, 64, 4
    $region17: #{tpu_custom_call.1} parent=1 // pred_fallthru
      _
    // Predicated region
    $region18: #{tpu_custom_call.1} parent=1 // pred_check
      _
    $region19: #{tpu_custom_call.1} parent=1 // pred_check_branch
      %56 = sbr.rel (0) target = $region21
    $region20: #{tpu_custom_call.1} parent=1 // pred_region
      _
    $region21: #{tpu_custom_call.1} parent=1 // pred_fallthru
      _
    // Predicated region
    $region22: #{tpu_custom_call.1} parent=1 // pred_check
      _
    $region23: #{tpu_custom_call.1} parent=1 // pred_check_branch
      %58 = sbr.rel (0) target = $region25
    $region24: #{tpu_custom_call.1} parent=1 // pred_region
      %s60 = ssub.s32 2048, 2048
      %61 = vsyncadd [#allocation10], %s60
      %s62 = sshll.u32 [#allocation9], 4
      %s63 = int_to_ptr.vmem [resolvable:$true] %s62
      %68 = dma.hbm_to_vmem [thread:$0]  %s5, 2048, %s63, [#allocation10], 128, 128, 8
    $region25: #{tpu_custom_call.1} parent=1 // pred_fallthru
      _
    // Predicated region
    $region26: #{tpu_custom_call.1} parent=1 // pred_check
      _
    $region27: #{tpu_custom_call.1} parent=1 // pred_check_branch
      %70 = sbr.rel (0) target = $region29
    $region28: #{tpu_custom_call.1} parent=1 // pred_region
      _
    $region29: #{tpu_custom_call.1} parent=1 // pred_fallthru
      _
    // Predicated region
    $region30: #{tpu_custom_call.1} parent=1 // pred_check
      _
    $region31: #{tpu_custom_call.1} parent=1 // pred_check_branch
      %72 = sbr.rel (0) target = $region33
    $region32: #{tpu_custom_call.1} parent=1 // pred_region
      %73 = dma.done [#allocation4], 256
    $region33: #{tpu_custom_call.1} parent=1 // pred_fallthru
      _
    // Predicated region
    $region34: #{tpu_custom_call.1} parent=1 // pred_check
      _
    $region35: #{tpu_custom_call.1} parent=1 // pred_check_branch
      %75 = sbr.rel (0) target = $region37
    $region36: #{tpu_custom_call.1} parent=1 // pred_region
      %76 = dma.done [#allocation7], 4096
    $region37: #{tpu_custom_call.1} parent=1 // pred_fallthru
      _
    // Predicated region
    $region38: #{tpu_custom_call.1} parent=1 // pred_check
      _
    $region39: #{tpu_custom_call.1} parent=1 // pred_check_branch
      %78 = sbr.rel (0) target = $region41
    $region40: #{tpu_custom_call.1} parent=1 // pred_region
      %79 = dma.done [#allocation7], 1024
    $region41: #{tpu_custom_call.1} parent=1 // pred_fallthru
      _
    // Predicated region
    $region42: #{tpu_custom_call.1} parent=1 // pred_check
      _
    $region43: #{tpu_custom_call.1} parent=1 // pred_check_branch
      %81 = sbr.rel (0) target = $region45
    $region44: #{tpu_custom_call.1} parent=1 // pred_region
      %82 = dma.done [#allocation10], 2048
    $region45: #{tpu_custom_call.1} parent=1 // pred_fallthru
      _
    %p84 = scmp.eq.s32.totalorder 0, 0
    // Predicated region
    $region46: #{tpu_custom_call.1} parent=1 // pred_check
      %p85 = pneg %p84
    $region47: #{tpu_custom_call.1} parent=1 // pred_check_branch
      %87 = sbr.rel (%p85) target = $region49
    $region48: #{tpu_custom_call.1} parent=1 // pred_region
      %88 = vst [vmem:[#allocation2] sm:$0xff] 0.0
    $region49: #{tpu_custom_call.1} parent=1 // pred_fallthru
      _
    %v89 = vld [vmem:[#allocation2] sm:$0xff]
    %v90 = vld [vmem:[#allocation3] sm:$0xff]
    %v91 = vld [vmem:[#allocation3 + $0x8] sm:$0xff]
    %v92 = vld [vmem:[#allocation6] sm:$0xf]
    %v93 = vld [vmem:[#allocation6 + $0x4] sm:$0xf]
    %v94 = vld [vmem:[#allocation6 + $0x8] sm:$0xf]
    %v95 = vld [vmem:[#allocation6 + $0xc] sm:$0xf]
    %v96 = vld [vmem:[#allocation6 + $0x10] sm:$0xf]
    %v97 = vld [vmem:[#allocation6 + $0x14] sm:$0xf]
    %v98 = vld [vmem:[#allocation6 + $0x18] sm:$0xf]
    %v99 = vld [vmem:[#allocation6 + $0x1c] sm:$0xf]
    %v100 = vld [vmem:[#allocation6 + $0x20] sm:$0xf]
    %v101 = vld [vmem:[#allocation6 + $0x24] sm:$0xf]
    %v102 = vld [vmem:[#allocation6 + $0x28] sm:$0xf]
    %v103 = vld [vmem:[#allocation6 + $0x2c] sm:$0xf]
    %v104 = vld [vmem:[#allocation6 + $0x30] sm:$0xf]
    %v105 = vld [vmem:[#allocation6 + $0x34] sm:$0xf]
    %v106 = vld [vmem:[#allocation6 + $0x38] sm:$0xf]
    %v107 = vld [vmem:[#allocation6 + $0x3c] sm:$0xf]
    %v108 = vld [vmem:[#allocation6 + $0x40] sm:$0xf]
    %v109 = vld [vmem:[#allocation6 + $0x44] sm:$0xf]
    %v110 = vld [vmem:[#allocation6 + $0x48] sm:$0xf]
    %v111 = vld [vmem:[#allocation6 + $0x4c] sm:$0xf]
    %v112 = vld [vmem:[#allocation6 + $0x50] sm:$0xf]
    %v113 = vld [vmem:[#allocation6 + $0x54] sm:$0xf]
    %v114 = vld [vmem:[#allocation6 + $0x58] sm:$0xf]
    %v115 = vld [vmem:[#allocation6 + $0x5c] sm:$0xf]
    %v116 = vld [vmem:[#allocation6 + $0x60] sm:$0xf]
    %v117 = vld [vmem:[#allocation6 + $0x64] sm:$0xf]
    %v118 = vld [vmem:[#allocation6 + $0x68] sm:$0xf]
    %v119 = vld [vmem:[#allocation6 + $0x6c] sm:$0xf]
    %v120 = vld [vmem:[#allocation6 + $0x70] sm:$0xf]
    %v121 = vld [vmem:[#allocation6 + $0x74] sm:$0xf]
    %v122 = vld [vmem:[#allocation6 + $0x78] sm:$0xf]
    %v123 = vld [vmem:[#allocation6 + $0x7c] sm:$0xf]
    %v124 = vld [vmem:[#allocation6 + $0x80] sm:$0xf]
    %v125 = vld [vmem:[#allocation6 + $0x84] sm:$0xf]
    %v126 = vld [vmem:[#allocation6 + $0x88] sm:$0xf]
    %v127 = vld [vmem:[#allocation6 + $0x8c] sm:$0xf]
    %v128 = vld [vmem:[#allocation6 + $0x90] sm:$0xf]
    %v129 = vld [vmem:[#allocation6 + $0x94] sm:$0xf]
    %v130 = vld [vmem:[#allocation6 + $0x98] sm:$0xf]
    %v131 = vld [vmem:[#allocation6 + $0x9c] sm:$0xf]
    %v132 = vld [vmem:[#allocation6 + $0xa0] sm:$0xf]
    %v133 = vld [vmem:[#allocation6 + $0xa4] sm:$0xf]
    %v134 = vld [vmem:[#allocation6 + $0xa8] sm:$0xf]
    %v135 = vld [vmem:[#allocation6 + $0xac] sm:$0xf]
    %v136 = vld [vmem:[#allocation6 + $0xb0] sm:$0xf]
    %v137 = vld [vmem:[#allocation6 + $0xb4] sm:$0xf]
    %v138 = vld [vmem:[#allocation6 + $0xb8] sm:$0xf]
    %v139 = vld [vmem:[#allocation6 + $0xbc] sm:$0xf]
    %v140 = vld [vmem:[#allocation6 + $0xc0] sm:$0xf]
    %v141 = vld [vmem:[#allocation6 + $0xc4] sm:$0xf]
    %v142 = vld [vmem:[#allocation6 + $0xc8] sm:$0xf]
    %v143 = vld [vmem:[#allocation6 + $0xcc] sm:$0xf]
    %v144 = vld [vmem:[#allocation6 + $0xd0] sm:$0xf]
    %v145 = vld [vmem:[#allocation6 + $0xd4] sm:$0xf]
    %v146 = vld [vmem:[#allocation6 + $0xd8] sm:$0xf]
    %v147 = vld [vmem:[#allocation6 + $0xdc] sm:$0xf]
    %v148 = vld [vmem:[#allocation6 + $0xe0] sm:$0xf]
    %v149 = vld [vmem:[#allocation6 + $0xe4] sm:$0xf]
    %v150 = vld [vmem:[#allocation6 + $0xe8] sm:$0xf]
    %v151 = vld [vmem:[#allocation6 + $0xec] sm:$0xf]
    %v152 = vld [vmem:[#allocation6 + $0xf0] sm:$0xf]
    %v153 = vld [vmem:[#allocation6 + $0xf4] sm:$0xf]
    %v154 = vld [vmem:[#allocation6 + $0xf8] sm:$0xf]
    %v155 = vld [vmem:[#allocation6 + $0xfc] sm:$0xf]
    %v158 = vunpack.c.l.b16 %v90
    %v159 = vunpack.c.h.b16 %v90
    %v160 = vunpack.c.l.b16 %v91
    %v161 = vunpack.c.h.b16 %v91
    %v162 = vpack.c.b16 %v158, %v158
    %v163 = vpack.c.b16 %v159, %v159
    %v164 = vpack.c.b16 %v160, %v160
    %v165 = vpack.c.b16 %v161, %v161
    %v234 = vunpack.c.l.b16 %v92
    %v235 = vunpack.c.l.b16 %v93
    %v236 = vunpack.c.l.b16 %v94
    %v237 = vunpack.c.l.b16 %v95
    %v238 = vunpack.c.l.b16 %v96
    %v239 = vunpack.c.l.b16 %v97
    %v240 = vunpack.c.l.b16 %v98
    %v241 = vunpack.c.l.b16 %v99
    %v242 = vunpack.c.l.b16 %v100
    %v243 = vunpack.c.l.b16 %v101
    %v244 = vunpack.c.l.b16 %v102
    %v245 = vunpack.c.l.b16 %v103
    %v246 = vunpack.c.l.b16 %v104
    %v247 = vunpack.c.l.b16 %v105
    %v248 = vunpack.c.l.b16 %v106
    %v249 = vunpack.c.l.b16 %v107
    %v250 = vunpack.c.l.b16 %v108
    %v251 = vunpack.c.l.b16 %v109
    %v252 = vunpack.c.l.b16 %v110
    %v253 = vunpack.c.l.b16 %v111
    %v254 = vunpack.c.l.b16 %v112
    %v255 = vunpack.c.l.b16 %v113
    %v256 = vunpack.c.l.b16 %v114
    %v257 = vunpack.c.l.b16 %v115
    %v258 = vunpack.c.l.b16 %v116
    %v259 = vunpack.c.l.b16 %v117
    %v260 = vunpack.c.l.b16 %v118
    %v261 = vunpack.c.l.b16 %v119
    %v262 = vunpack.c.l.b16 %v120
    %v263 = vunpack.c.l.b16 %v121
    %v264 = vunpack.c.l.b16 %v122
    %v265 = vunpack.c.l.b16 %v123
    %v266 = vunpack.c.l.b16 %v124
    %v267 = vunpack.c.l.b16 %v125
    %v268 = vunpack.c.l.b16 %v126
    %v269 = vunpack.c.l.b16 %v127
    %v270 = vunpack.c.l.b16 %v128
    %v271 = vunpack.c.l.b16 %v129
    %v272 = vunpack.c.l.b16 %v130
    %v273 = vunpack.c.l.b16 %v131
    %v274 = vunpack.c.l.b16 %v132
    %v275 = vunpack.c.l.b16 %v133
    %v276 = vunpack.c.l.b16 %v134
    %v277 = vunpack.c.l.b16 %v135
    %v278 = vunpack.c.l.b16 %v136
    %v279 = vunpack.c.l.b16 %v137
    %v280 = vunpack.c.l.b16 %v138
    %v281 = vunpack.c.l.b16 %v139
    %v282 = vunpack.c.l.b16 %v140
    %v283 = vunpack.c.l.b16 %v141
    %v284 = vunpack.c.l.b16 %v142
    %v285 = vunpack.c.l.b16 %v143
    %v286 = vunpack.c.l.b16 %v144
    %v287 = vunpack.c.l.b16 %v145
    %v288 = vunpack.c.l.b16 %v146
    %v289 = vunpack.c.l.b16 %v147
    %v290 = vunpack.c.l.b16 %v148
    %v291 = vunpack.c.l.b16 %v149
    %v292 = vunpack.c.l.b16 %v150
    %v293 = vunpack.c.l.b16 %v151
    %v294 = vunpack.c.l.b16 %v152
    %v295 = vunpack.c.l.b16 %v153
    %v296 = vunpack.c.l.b16 %v154
    %v297 = vunpack.c.l.b16 %v155
    %v298 = vpack.c.b16 %v235, %v234
    %v299 = vpack.c.b16 %v237, %v236
    %v300 = vpack.c.b16 %v239, %v238
    %v301 = vpack.c.b16 %v241, %v240
    %v302 = vpack.c.b16 %v243, %v242
    %v303 = vpack.c.b16 %v245, %v244
    %v304 = vpack.c.b16 %v247, %v246
    %v305 = vpack.c.b16 %v249, %v248
    %v306 = vpack.c.b16 %v251, %v250
    %v307 = vpack.c.b16 %v253, %v252
    %v308 = vpack.c.b16 %v255, %v254
    %v309 = vpack.c.b16 %v257, %v256
    %v310 = vpack.c.b16 %v259, %v258
    %v311 = vpack.c.b16 %v261, %v260
    %v312 = vpack.c.b16 %v263, %v262
    %v313 = vpack.c.b16 %v265, %v264
    %v314 = vpack.c.b16 %v267, %v266
    %v315 = vpack.c.b16 %v269, %v268
    %v316 = vpack.c.b16 %v271, %v270
    %v317 = vpack.c.b16 %v273, %v272
    %v318 = vpack.c.b16 %v275, %v274
    %v319 = vpack.c.b16 %v277, %v276
    %v320 = vpack.c.b16 %v279, %v278
    %v321 = vpack.c.b16 %v281, %v280
    %v322 = vpack.c.b16 %v283, %v282
    %v323 = vpack.c.b16 %v285, %v284
    %v324 = vpack.c.b16 %v287, %v286
    %v325 = vpack.c.b16 %v289, %v288
    %v326 = vpack.c.b16 %v291, %v290
    %v327 = vpack.c.b16 %v293, %v292
    %v328 = vpack.c.b16 %v295, %v294
    %v329 = vpack.c.b16 %v297, %v296
    %362 = vmatprep.subr.bf16.mxu0 0
    %363 = vmatpush1.bf16.msra.mxu0 %v305
    %364 = vmatprep.subr.bf16.mxu0 0
    %365 = vmatpush1.bf16.msra.mxu0 %v304
    %366 = vmatprep.subr.bf16.mxu0 0
    %367 = vmatpush1.bf16.msra.mxu0 %v303
    %368 = vmatprep.subr.bf16.mxu0 0
    %369 = vmatpush1.bf16.msra.mxu0 %v302
    %370 = vmatprep.subr.bf16.mxu0 0
    %371 = vmatpush1.bf16.msra.mxu0 %v301
    %372 = vmatprep.subr.bf16.mxu0 0
    %373 = vmatpush1.bf16.msra.mxu0 %v300
    %374 = vmatprep.subr.bf16.mxu0 0
    %375 = vmatpush1.bf16.msra.mxu0 %v299
    %376 = vmatprep.subr.bf16.mxu0 0
    %377 = vmatpush1.bf16.msra.mxu0 %v298
    %378 = vmatprep.subr.bf16.mxu0 0
    %379 = vmatpush2.bf16.msra.mxu0 %v313
    %380 = vmatprep.subr.bf16.mxu0 0
    %381 = vmatpush2.bf16.msra.mxu0 %v312
    %382 = vmatprep.subr.bf16.mxu0 0
    %383 = vmatpush2.bf16.msra.mxu0 %v311
    %384 = vmatprep.subr.bf16.mxu0 0
    %385 = vmatpush2.bf16.msra.mxu0 %v310
    %386 = vmatprep.subr.bf16.mxu0 0
    %387 = vmatpush2.bf16.msra.mxu0 %v309
    %388 = vmatprep.subr.bf16.mxu0 0
    %389 = vmatpush2.bf16.msra.mxu0 %v308
    %390 = vmatprep.subr.bf16.mxu0 0
    %391 = vmatpush2.bf16.msra.mxu0 %v307
    %392 = vmatprep.subr.bf16.mxu0 0
    %393 = vmatpush2.bf16.msra.mxu0 %v306
    %394 = vmatprep.mubr.bf16.mxu0 %v163
    %395 = vmatmul.mubr.bf16.gmra.mxu0 %v162
    %v396 = vpop.f32.mrf.mxu0
    %v397 = vadd.f32 0.0, %v396
    %v398 = vpop.f32.mrf.mxu0
    %v399 = vpop.f32.mrf.mxu0
    %v400 = vpop.f32.mrf.mxu0
    %401 = vdwg.mxu0
    %402 = vmatprep.subr.bf16.mxu0 0
    %403 = vmatpush1.bf16.msra.mxu0 %v321
    %404 = vmatprep.subr.bf16.mxu0 0
    %405 = vmatpush1.bf16.msra.mxu0 %v320
    %406 = vmatprep.subr.bf16.mxu0 0
    %407 = vmatpush1.bf16.msra.mxu0 %v319
    %408 = vmatprep.subr.bf16.mxu0 0
    %409 = vmatpush1.bf16.msra.mxu0 %v318
    %410 = vmatprep.subr.bf16.mxu0 0
    %411 = vmatpush1.bf16.msra.mxu0 %v317
    %412 = vmatprep.subr.bf16.mxu0 0
    %413 = vmatpush1.bf16.msra.mxu0 %v316
    %414 = vmatprep.subr.bf16.mxu0 0
    %415 = vmatpush1.bf16.msra.mxu0 %v315
    %416 = vmatprep.subr.bf16.mxu0 0
    %417 = vmatpush1.bf16.msra.mxu0 %v314
    %418 = vmatprep.subr.bf16.mxu0 0
    %419 = vmatpush2.bf16.msra.mxu0 %v329
    %420 = vmatprep.subr.bf16.mxu0 0
    %421 = vmatpush2.bf16.msra.mxu0 %v328
    %422 = vmatprep.subr.bf16.mxu0 0
    %423 = vmatpush2.bf16.msra.mxu0 %v327
    %424 = vmatprep.subr.bf16.mxu0 0
    %425 = vmatpush2.bf16.msra.mxu0 %v326
    %426 = vmatprep.subr.bf16.mxu0 0
    %427 = vmatpush2.bf16.msra.mxu0 %v325
    %428 = vmatprep.subr.bf16.mxu0 0
    %429 = vmatpush2.bf16.msra.mxu0 %v324
    %430 = vmatprep.subr.bf16.mxu0 0
    %431 = vmatpush2.bf16.msra.mxu0 %v323
    %432 = vmatprep.subr.bf16.mxu0 0
    %433 = vmatpush2.bf16.msra.mxu0 %v322
    %434 = vmatprep.mubr.bf16.mxu0 %v165
    %435 = vmatmul.mubr.bf16.gmra.mxu0 %v164
    %v436 = vpop.f32.mrf.mxu0
    %v437 = vadd.f32 %v397, %v436
    %v438 = vpop.f32.mrf.mxu0
    %v439 = vpop.f32.mrf.mxu0
    %v440 = vpop.f32.mrf.mxu0
    %441 = vdwg.mxu0
    %v442 = vadd.f32 %v89, %v437
    %443 = vst [vmem:[#allocation2] sm:$0xff] %v442
    // Predicated region
    $region50: #{tpu_custom_call.1} parent=1 // pred_check
      %p444 = pneg %p84
    $region51: #{tpu_custom_call.1} parent=1 // pred_check_branch
      %446 = sbr.rel (%p444) target = $region53
    $region52: #{tpu_custom_call.1} parent=1 // pred_region
      %v447 = vld [vmem:[#allocation2] sm:$0xff]
      %v448 = vld [vmem:[%s2] sm:$0x1]
      %v450 = vlaneseq
      %v451 = vshrl.u32 %v450, 7
      %v452 = vsub.s32 0, %v451
      %v453 = vrot.slane %v448, %v452
      %v455 = vadd.f32 %v447, %v453
      %v456 = vmax.f32 %v455, 0.0
      %457 = vst [vmem:[#allocation12] sm:$0xff] %v456
      %v458 = vpack.c.bf16 %v456, %v456
      %v459 = vld [vmem:[#allocation8] sm:$0xf]
      %v460 = vld [vmem:[#allocation8 + $0x4] sm:$0xf]
      %v461 = vld [vmem:[#allocation8 + $0x8] sm:$0xf]
      %v462 = vld [vmem:[#allocation8 + $0xc] sm:$0xf]
      %v463 = vld [vmem:[#allocation8 + $0x10] sm:$0xf]
      %v464 = vld [vmem:[#allocation8 + $0x14] sm:$0xf]
      %v465 = vld [vmem:[#allocation8 + $0x18] sm:$0xf]
      %v466 = vld [vmem:[#allocation8 + $0x1c] sm:$0xf]
      %v467 = vld [vmem:[#allocation8 + $0x20] sm:$0xf]
      %v468 = vld [vmem:[#allocation8 + $0x24] sm:$0xf]
      %v469 = vld [vmem:[#allocation8 + $0x28] sm:$0xf]
      %v470 = vld [vmem:[#allocation8 + $0x2c] sm:$0xf]
      %v471 = vld [vmem:[#allocation8 + $0x30] sm:$0xf]
      %v472 = vld [vmem:[#allocation8 + $0x34] sm:$0xf]
      %v473 = vld [vmem:[#allocation8 + $0x38] sm:$0xf]
      %v474 = vld [vmem:[#allocation8 + $0x3c] sm:$0xf]
      %v475 = vld [vmem:[%s4] sm:$0x1]
      %v477 = vlaneseq
      %v478 = vshrl.u32 %v477, 7
      %v479 = vsub.s32 0, %v478
      %v480 = vrot.slane %v475, %v479
      %v498 = vunpack.c.l.b16 %v459
      %v499 = vunpack.c.l.b16 %v460
      %v500 = vunpack.c.l.b16 %v461
      %v501 = vunpack.c.l.b16 %v462
      %v502 = vunpack.c.l.b16 %v463
      %v503 = vunpack.c.l.b16 %v464
      %v504 = vunpack.c.l.b16 %v465
      %v505 = vunpack.c.l.b16 %v466
      %v506 = vunpack.c.l.b16 %v467
      %v507 = vunpack.c.l.b16 %v468
      %v508 = vunpack.c.l.b16 %v469
      %v509 = vunpack.c.l.b16 %v470
      %v510 = vunpack.c.l.b16 %v471
      %v511 = vunpack.c.l.b16 %v472
      %v512 = vunpack.c.l.b16 %v473
      %v513 = vunpack.c.l.b16 %v474
      %v514 = vpack.c.b16 %v499, %v498
      %v515 = vpack.c.b16 %v501, %v500
      %v516 = vpack.c.b16 %v503, %v502
      %v517 = vpack.c.b16 %v505, %v504
      %v518 = vpack.c.b16 %v507, %v506
      %v519 = vpack.c.b16 %v509, %v508
      %v520 = vpack.c.b16 %v511, %v510
      %v521 = vpack.c.b16 %v513, %v512
      %530 = vmatprep.subr.bf16.mxu0 0
      %531 = vmatpush1.bf16.msra.mxu0 %v521
      %532 = vmatprep.subr.bf16.mxu0 0
      %533 = vmatpush1.bf16.msra.mxu0 %v520
      %534 = vmatprep.subr.bf16.mxu0 0
      %535 = vmatpush1.bf16.msra.mxu0 %v519
      %536 = vmatprep.subr.bf16.mxu0 0
      %537 = vmatpush1.bf16.msra.mxu0 %v518
      %538 = vmatprep.subr.bf16.mxu0 0
      %539 = vmatpush1.bf16.msra.mxu0 %v517
      %540 = vmatprep.subr.bf16.mxu0 0
      %541 = vmatpush1.bf16.msra.mxu0 %v516
      %542 = vmatprep.subr.bf16.mxu0 0
      %543 = vmatpush1.bf16.msra.mxu0 %v515
      %544 = vmatprep.subr.bf16.mxu0 0
      %545 = vmatpush1.bf16.msra.mxu0 %v514
      %546 = vmatprep.subr.bf16.mxu0 0
      %547 = vmatpush2.bf16.msra.mxu0 0
      %548 = vmatprep.subr.bf16.mxu0 0
      %549 = vmatpush2.bf16.msra.mxu0 0
      %550 = vmatprep.subr.bf16.mxu0 0
      %551 = vmatpush2.bf16.msra.mxu0 0
      %552 = vmatprep.subr.bf16.mxu0 0
      %553 = vmatpush2.bf16.msra.mxu0 0
      %554 = vmatprep.subr.bf16.mxu0 0
      %555 = vmatpush2.bf16.msra.mxu0 0
      %556 = vmatprep.subr.bf16.mxu0 0
      %557 = vmatpush2.bf16.msra.mxu0 0
      %558 = vmatprep.subr.bf16.mxu0 0
      %559 = vmatpush2.bf16.msra.mxu0 0
      %560 = vmatprep.subr.bf16.mxu0 0
      %561 = vmatpush2.bf16.msra.mxu0 0
      %562 = vmatprep.mubr.bf16.mxu0 0
      %563 = vmatmul.mubr.bf16.gmra.mxu0 %v458
      %v564 = vpop.f32.mrf.mxu0
      %v565 = vadd.f32 %v480, %v564
      %v566 = vpop.f32.mrf.mxu0
      %v567 = vpop.f32.mrf.mxu0
      %v568 = vpop.f32.mrf.mxu0
      %569 = vdwg.mxu0
      %v570 = vmax.f32 %v565, 0.0
      %v571 = vpack.c.bf16 %v570, %v570
      %v572 = vld [vmem:[#allocation9] sm:$0xff]
      %v573 = vld [vmem:[#allocation9 + $0x8] sm:$0xff]
      %v574 = vld [vmem:[#allocation9 + $0x10] sm:$0xff]
      %v575 = vld [vmem:[#allocation9 + $0x18] sm:$0xff]
      %v576 = vld [vmem:[#allocation9 + $0x20] sm:$0xff]
      %v577 = vld [vmem:[#allocation9 + $0x28] sm:$0xff]
      %v578 = vld [vmem:[#allocation9 + $0x30] sm:$0xff]
      %v579 = vld [vmem:[#allocation9 + $0x38] sm:$0xff]
      %v580 = vld [vmem:[#allocation9 + $0x40] sm:$0xff]
      %v581 = vld [vmem:[#allocation9 + $0x48] sm:$0xff]
      %v582 = vld [vmem:[#allocation9 + $0x50] sm:$0xff]
      %v583 = vld [vmem:[#allocation9 + $0x58] sm:$0xff]
      %v584 = vld [vmem:[#allocation9 + $0x60] sm:$0xff]
      %v585 = vld [vmem:[#allocation9 + $0x68] sm:$0xff]
      %v586 = vld [vmem:[#allocation9 + $0x70] sm:$0xff]
      %v587 = vld [vmem:[#allocation9 + $0x78] sm:$0xff]
      %v588 = vld [vmem:[%s6] sm:$0x3]
      %v590 = vlaneseq
      %v591 = vshrl.u32 %v590, 7
      %v592 = vsub.s32 0, %v591
      %v593 = vrot.slane %v588, %v592
      %v594 = vlaneseq
      %v595 = vshrl.u32 %v594, 7
      %v596 = vsub.s32 1, %v595
      %v597 = vrot.slane %v588, %v596
      %v616 = vunpack.c.l.b16 %v572
      %v617 = vunpack.c.h.b16 %v572
      %v618 = vunpack.c.l.b16 %v573
      %v619 = vunpack.c.h.b16 %v573
      %v620 = vunpack.c.l.b16 %v574
      %v621 = vunpack.c.h.b16 %v574
      %v622 = vunpack.c.l.b16 %v575
      %v623 = vunpack.c.h.b16 %v575
      %v624 = vunpack.c.l.b16 %v576
      %v625 = vunpack.c.h.b16 %v576
      %v626 = vunpack.c.l.b16 %v577
      %v627 = vunpack.c.h.b16 %v577
      %v628 = vunpack.c.l.b16 %v578
      %v629 = vunpack.c.h.b16 %v578
      %v630 = vunpack.c.l.b16 %v579
      %v631 = vunpack.c.h.b16 %v579
      %v632 = vunpack.c.l.b16 %v580
      %v633 = vunpack.c.h.b16 %v580
      %v634 = vunpack.c.l.b16 %v581
      %v635 = vunpack.c.h.b16 %v581
      %v636 = vunpack.c.l.b16 %v582
      %v637 = vunpack.c.h.b16 %v582
      %v638 = vunpack.c.l.b16 %v583
      %v639 = vunpack.c.h.b16 %v583
      %v640 = vunpack.c.l.b16 %v584
      %v641 = vunpack.c.h.b16 %v584
      %v642 = vunpack.c.l.b16 %v585
      %v643 = vunpack.c.h.b16 %v585
      %v644 = vunpack.c.l.b16 %v586
      %v645 = vunpack.c.h.b16 %v586
      %v646 = vunpack.c.l.b16 %v587
      %v647 = vunpack.c.h.b16 %v587
      %v648 = vpack.c.b16 %v618, %v616
      %v649 = vpack.c.b16 %v619, %v617
      %v650 = vpack.c.b16 %v622, %v620
      %v651 = vpack.c.b16 %v623, %v621
      %v652 = vpack.c.b16 %v626, %v624
      %v653 = vpack.c.b16 %v627, %v625
      %v654 = vpack.c.b16 %v630, %v628
      %v655 = vpack.c.b16 %v631, %v629
      %v656 = vpack.c.b16 %v634, %v632
      %v657 = vpack.c.b16 %v635, %v633
      %v658 = vpack.c.b16 %v638, %v636
      %v659 = vpack.c.b16 %v639, %v637
      %v660 = vpack.c.b16 %v642, %v640
      %v661 = vpack.c.b16 %v643, %v641
      %v662 = vpack.c.b16 %v646, %v644
      %v663 = vpack.c.b16 %v647, %v645
      %680 = vmatprep.subr.bf16.mxu0 %v663
      %681 = vmatpush1.bf16.msra.mxu0 %v662
      %682 = vmatprep.subr.bf16.mxu0 %v661
      %683 = vmatpush1.bf16.msra.mxu0 %v660
      %684 = vmatprep.subr.bf16.mxu0 %v659
      %685 = vmatpush1.bf16.msra.mxu0 %v658
      %686 = vmatprep.subr.bf16.mxu0 %v657
      %687 = vmatpush1.bf16.msra.mxu0 %v656
      %688 = vmatprep.subr.bf16.mxu0 %v655
      %689 = vmatpush1.bf16.msra.mxu0 %v654
      %690 = vmatprep.subr.bf16.mxu0 %v653
      %691 = vmatpush1.bf16.msra.mxu0 %v652
      %692 = vmatprep.subr.bf16.mxu0 %v651
      %693 = vmatpush1.bf16.msra.mxu0 %v650
      %694 = vmatprep.subr.bf16.mxu0 %v649
      %695 = vmatpush1.bf16.msra.mxu0 %v648
      %696 = vmatprep.subr.bf16.mxu0 0
      %697 = vmatpush2.bf16.msra.mxu0 0
      %698 = vmatprep.subr.bf16.mxu0 0
      %699 = vmatpush2.bf16.msra.mxu0 0
      %700 = vmatprep.subr.bf16.mxu0 0
      %701 = vmatpush2.bf16.msra.mxu0 0
      %702 = vmatprep.subr.bf16.mxu0 0
      %703 = vmatpush2.bf16.msra.mxu0 0
      %704 = vmatprep.subr.bf16.mxu0 0
      %705 = vmatpush2.bf16.msra.mxu0 0
      %706 = vmatprep.subr.bf16.mxu0 0
      %707 = vmatpush2.bf16.msra.mxu0 0
      %708 = vmatprep.subr.bf16.mxu0 0
      %709 = vmatpush2.bf16.msra.mxu0 0
      %710 = vmatprep.subr.bf16.mxu0 0
      %711 = vmatpush2.bf16.msra.mxu0 0
      %712 = vmatprep.mubr.bf16.mxu0 0
      %713 = vmatmul.mubr.bf16.gmra.mxu0 %v571
      %v714 = vpop.f32.mrf.mxu0
      %v715 = vadd.f32 %v593, %v714
      %v716 = vpop.f32.mrf.mxu0
      %v717 = vadd.f32 %v597, %v716
      %v718 = vpop.f32.mrf.mxu0
      %v719 = vpop.f32.mrf.mxu0
      %720 = vdwg.mxu0
      %721 = vst [vmem:[#allocation11] sm:$0xff] %v715
      %722 = vst [vmem:[#allocation11 + $0x8] sm:$0xff] %v717
    $region53: #{tpu_custom_call.1} parent=1 // pred_fallthru
      _
    // Predicated region
    $region54: #{tpu_custom_call.1} parent=1 // pred_check
      _
    $region55: #{tpu_custom_call.1} parent=1 // pred_check_branch
      %724 = sbr.rel (0) target = $region57
    $region56: #{tpu_custom_call.1} parent=1 // pred_region
      %s726 = ssub.s32 256, 256
      %727 = vsyncadd [#allocation5], %s726
      %s729 = sshll.u32 [#allocation11], 4
      %s730 = int_to_ptr.vmem [resolvable:$true] %s729
      %732 = dma.vmem_to_hbm [thread:$0]  %s730, 256, %s7, [#allocation5]
    $region57: #{tpu_custom_call.1} parent=1 // pred_fallthru
      _
    // Predicated region
    $region58: #{tpu_custom_call.1} parent=1 // pred_check
      _
    $region59: #{tpu_custom_call.1} parent=1 // pred_check_branch
      %734 = sbr.rel (0) target = $region61
    $region60: #{tpu_custom_call.1} parent=1 // pred_region
      %s736 = ssub.s32 128, 128
      %737 = vsyncadd [#allocation13], %s736
      %s739 = sshll.u32 [#allocation12], 4
      %s740 = int_to_ptr.vmem [resolvable:$true] %s739
      %742 = dma.vmem_to_hbm [thread:$0]  %s740, 128, %s8, [#allocation13]
    $region61: #{tpu_custom_call.1} parent=1 // pred_fallthru
      _
    // Predicated region
    $region62: #{tpu_custom_call.1} parent=1 // pred_check
      _
    $region63: #{tpu_custom_call.1} parent=1 // pred_check_branch
      %744 = sbr.rel (0) target = $region65
    $region64: #{tpu_custom_call.1} parent=1 // pred_region
      %745 = dma.done [#allocation5], 256
    $region65: #{tpu_custom_call.1} parent=1 // pred_fallthru
      _
    // Predicated region
    $region66: #{tpu_custom_call.1} parent=1 // pred_check
      _
    $region67: #{tpu_custom_call.1} parent=1 // pred_check_branch
      %747 = sbr.rel (0) target = $region69
    $region68: #{tpu_custom_call.1} parent=1 // pred_region
      %748 = dma.done [#allocation13], 128
    $region69: #{tpu_custom_call.1} parent=1 // pred_fallthru
      _
    %749 = vsyncpa [#allocation4], 1
    %750 = vsyncpa [#allocation7], 1
    %751 = vsyncpa [#allocation10], 1
    %752 = vsyncpa [#allocation5], 1
    %753 = vsyncpa [#allocation13], 1

// kernel: tpu_custom_call.1
$region0: #{tpu_custom_call.1}
  #allocation0 [shape = 'u32[]', space=smem, size = 0x4, offset = 0x4, fixed_abs, tag = 'smem constant byte address 0x4 - core index']
  #allocation1 [shape = 'u32[144,128]{1,0:T(1,128)}', space=vmem, size = 0x12000, scoped, tag = 'internal scratch']
  #allocation2 [shape = 'f32[8,128]{1,0:T(8,128)}', space=vmem, size = 0x1000, scoped, tag = 'scratch operand']
  %s0 = inlined_call_operand.hbm [shape: bf16[8,512], index: 0, kind: input, shape index: {}]
  %s1 = inlined_call_operand.hbm [shape: bf16[512,128], index: 1, kind: input, shape index: {}]
  %s2 = inlined_call_operand.vmem [shape: f32[1,128], index: 2, kind: input, shape index: {}]
  %s3 = inlined_call_operand.hbm [shape: bf16[128,128], index: 3, kind: input, shape index: {}]
  %s4 = inlined_call_operand.vmem [shape: f32[1,128], index: 4, kind: input, shape index: {}]
  %s5 = inlined_call_operand.hbm [shape: bf16[128,256], index: 5, kind: input, shape index: {}]
  %s6 = inlined_call_operand.vmem [shape: f32[1,256], index: 6, kind: input, shape index: {}]
  %s7 = inlined_call_operand.hbm [shape: f32[8,256], index: 7, kind: output, shape index: {0}]
  %s8 = inlined_call_operand.hbm [shape: f32[8,128], index: 8, kind: output, shape index: {1}]
  %9 = xla_tuple %s7, %s8
  %s10 = sld [smem:[#allocation0]]
  $region70: #{tpu_custom_call.1} parent=0
    _
  %s12 = ssub.s32 1, %s10
  %s13 = scalar_select 0, %s12, %s10
  $region1: #{tpu_custom_call.1} parent=0
    #allocation3 [shape = 'u8[8192]{0}', space=vmem, size = 0x2000, scoped, tag = 'input window, operand 0, single buffered']
    #allocation4 [shape = 's32[1]{0}', space=sflag, size = 0x4, scoped, tag = 'scoped memory for tpu_custom_call.1']
    #allocation5 [shape = 's32[1]{0}', space=sflag, size = 0x4, scoped, tag = 'scoped memory for tpu_custom_call.1']
    #allocation6 [shape = 'u8[131072]{0}', space=vmem, size = 0x20000, scoped, tag = 'input window, operand 1, single buffered']
    #allocation7 [shape = 's32[1]{0}', space=sflag, size = 0x4, scoped, tag = 'scoped memory for tpu_custom_call.1']
    #allocation8 [shape = 'u8[32768]{0}', space=vmem, size = 0x8000, scoped, tag = 'input window, operand 3, single buffered']
    #allocation9 [shape = 'u8[65536]{0}', space=vmem, size = 0x10000, scoped, tag = 'input window, operand 5, single buffered']
    #allocation10 [shape = 's32[1]{0}', space=sflag, size = 0x4, scoped, tag = 'scoped memory for tpu_custom_call.1']
    #allocation11 [shape = 'u8[8192]{0}', space=vmem, size = 0x2000, scoped, tag = 'output window, operand 0, single buffered']
    #allocation12 [shape = 'u8[4096]{0}', space=vmem, size = 0x1000, scoped, tag = 'output window, operand 1, single buffered']
    #allocation13 [shape = 's32[1]{0}', space=sflag, size = 0x4, scoped, tag = 'scoped memory for tpu_custom_call.1']
    %14 = vsyncpa [#allocation4], 0
    %15 = vsyncpa [#allocation7], 0
    %16 = vsyncpa [#allocation10], 0
    %17 = vsyncpa [#allocation5], 0
    %18 = vsyncpa [#allocation13], 0
    // Predicated region
    $region2: #{tpu_custom_call.1} parent=1 // pred_check
      _
    $region3: #{tpu_custom_call.1} parent=1 // pred_check_branch
      %20 = sbr.rel (0) target = $region5
    $region4: #{tpu_custom_call.1} parent=1 // pred_region
      %s22 = ssub.s32 256, 256
      %23 = vsyncadd [#allocation4], %s22
      %s25 = sshll.u32 [#allocation3], 4
      %s26 = int_to_ptr.vmem [resolvable:$true] %s25
      %28 = dma.hbm_to_vmem [thread:$0]  %s0, 256, %s26, [#allocation4]
    $region5: #{tpu_custom_call.1} parent=1 // pred_fallthru
      _
    // Predicated region
    $region6: #{tpu_custom_call.1} parent=1 // pred_check
      _
    $region7: #{tpu_custom_call.1} parent=1 // pred_check_branch
      %30 = sbr.rel (0) target = $region9
    $region8: #{tpu_custom_call.1} parent=1 // pred_region
      %s32 = ssub.s32 4096, 4096
      %33 = vsyncadd [#allocation7], %s32
      %s34 = sshll.u32 [#allocation6], 4
      %s35 = int_to_ptr.vmem [resolvable:$true] %s34
      %40 = dma.hbm_to_vmem [thread:$0]  %s1, 4096, %s35, [#allocation7], 64, 64, 4
    $region9: #{tpu_custom_call.1} parent=1 // pred_fallthru
      _
    // Predicated region
    $region10: #{tpu_custom_call.1} parent=1 // pred_check
      _
    $region11: #{tpu_custom_call.1} parent=1 // pred_check_branch
      %42 = sbr.rel (0) target = $region13
    $region12: #{tpu_custom_call.1} parent=1 // pred_region
      _
    $region13: #{tpu_custom_call.1} parent=1 // pred_fallthru
      _
    // Predicated region
    $region14: #{tpu_custom_call.1} parent=1 // pred_check
      _
    $region15: #{tpu_custom_call.1} parent=1 // pred_check_branch
      %44 = sbr.rel (0) target = $region17
    $region16: #{tpu_custom_call.1} parent=1 // pred_region
      %s46 = ssub.s32 1024, 1024
      %47 = vsyncadd [#allocation7], %s46
      %s48 = sshll.u32 [#allocation8], 4
      %s49 = int_to_ptr.vmem [resolvable:$true] %s48
      %54 = dma.hbm_to_vmem [thread:$0]  %s3, 1024, %s49, [#allocation7], 64, 64, 4
    $region17: #{tpu_custom_call.1} parent=1 // pred_fallthru
      _
    // Predicated region
    $region18: #{tpu_custom_call.1} parent=1 // pred_check
      _
    $region19: #{tpu_custom_call.1} parent=1 // pred_check_branch
      %56 = sbr.rel (0) target = $region21
    $region20: #{tpu_custom_call.1} parent=1 // pred_region
      _
    $region21: #{tpu_custom_call.1} parent=1 // pred_fallthru
      _
    // Predicated region
    $region22: #{tpu_custom_call.1} parent=1 // pred_check
      _
    $region23: #{tpu_custom_call.1} parent=1 // pred_check_branch
      %58 = sbr.rel (0) target = $region25
    $region24: #{tpu_custom_call.1} parent=1 // pred_region
      %s60 = ssub.s32 2048, 2048
      %61 = vsyncadd [#allocation10], %s60
      %s62 = sshll.u32 [#allocation9], 4
      %s63 = int_to_ptr.vmem [resolvable:$true] %s62
      %68 = dma.hbm_to_vmem [thread:$0]  %s5, 2048, %s63, [#allocation10], 128, 128, 8
    $region25: #{tpu_custom_call.1} parent=1 // pred_fallthru
      _
    // Predicated region
    $region26: #{tpu_custom_call.1} parent=1 // pred_check
      _
    $region27: #{tpu_custom_call.1} parent=1 // pred_check_branch
      %70 = sbr.rel (0) target = $region29
    $region28: #{tpu_custom_call.1} parent=1 // pred_region
      _
    $region29: #{tpu_custom_call.1} parent=1 // pred_fallthru
      _
    // Predicated region
    $region30: #{tpu_custom_call.1} parent=1 // pred_check
      _
    $region31: #{tpu_custom_call.1} parent=1 // pred_check_branch
      %72 = sbr.rel (0) target = $region33
    $region32: #{tpu_custom_call.1} parent=1 // pred_region
      %73 = dma.done [#allocation4], 256
    $region33: #{tpu_custom_call.1} parent=1 // pred_fallthru
      _
    // Predicated region
    $region34: #{tpu_custom_call.1} parent=1 // pred_check
      _
    $region35: #{tpu_custom_call.1} parent=1 // pred_check_branch
      %75 = sbr.rel (0) target = $region37
    $region36: #{tpu_custom_call.1} parent=1 // pred_region
      %76 = dma.done [#allocation7], 4096
    $region37: #{tpu_custom_call.1} parent=1 // pred_fallthru
      _
    // Predicated region
    $region38: #{tpu_custom_call.1} parent=1 // pred_check
      _
    $region39: #{tpu_custom_call.1} parent=1 // pred_check_branch
      %78 = sbr.rel (0) target = $region41
    $region40: #{tpu_custom_call.1} parent=1 // pred_region
      %79 = dma.done [#allocation7], 1024
    $region41: #{tpu_custom_call.1} parent=1 // pred_fallthru
      _
    // Predicated region
    $region42: #{tpu_custom_call.1} parent=1 // pred_check
      _
    $region43: #{tpu_custom_call.1} parent=1 // pred_check_branch
      %81 = sbr.rel (0) target = $region45
    $region44: #{tpu_custom_call.1} parent=1 // pred_region
      %82 = dma.done [#allocation10], 2048
    $region45: #{tpu_custom_call.1} parent=1 // pred_fallthru
      _
    %p84 = scmp.eq.s32.totalorder 0, 0
    // Predicated region
    $region46: #{tpu_custom_call.1} parent=1 // pred_check
      %p85 = pneg %p84
    $region47: #{tpu_custom_call.1} parent=1 // pred_check_branch
      %87 = sbr.rel (%p85) target = $region49
    $region48: #{tpu_custom_call.1} parent=1 // pred_region
      %88 = vst [vmem:[#allocation2] sm:$0xff] 0.0
    $region49: #{tpu_custom_call.1} parent=1 // pred_fallthru
      _
    %v89 = vld [vmem:[#allocation2] sm:$0xff]
    %v90 = vld [vmem:[#allocation3] sm:$0xff]
    %v91 = vld [vmem:[#allocation3 + $0x8] sm:$0xff]
    %v92 = vld [vmem:[#allocation6] sm:$0xf]
    %v93 = vld [vmem:[#allocation6 + $0x4] sm:$0xf]
    %v94 = vld [vmem:[#allocation6 + $0x8] sm:$0xf]
    %v95 = vld [vmem:[#allocation6 + $0xc] sm:$0xf]
    %v96 = vld [vmem:[#allocation6 + $0x10] sm:$0xf]
    %v97 = vld [vmem:[#allocation6 + $0x14] sm:$0xf]
    %v98 = vld [vmem:[#allocation6 + $0x18] sm:$0xf]
    %v99 = vld [vmem:[#allocation6 + $0x1c] sm:$0xf]
    %v100 = vld [vmem:[#allocation6 + $0x20] sm:$0xf]
    %v101 = vld [vmem:[#allocation6 + $0x24] sm:$0xf]
    %v102 = vld [vmem:[#allocation6 + $0x28] sm:$0xf]
    %v103 = vld [vmem:[#allocation6 + $0x2c] sm:$0xf]
    %v104 = vld [vmem:[#allocation6 + $0x30] sm:$0xf]
    %v105 = vld [vmem:[#allocation6 + $0x34] sm:$0xf]
    %v106 = vld [vmem:[#allocation6 + $0x38] sm:$0xf]
    %v107 = vld [vmem:[#allocation6 + $0x3c] sm:$0xf]
    %v108 = vld [vmem:[#allocation6 + $0x40] sm:$0xf]
    %v109 = vld [vmem:[#allocation6 + $0x44] sm:$0xf]
    %v110 = vld [vmem:[#allocation6 + $0x48] sm:$0xf]
    %v111 = vld [vmem:[#allocation6 + $0x4c] sm:$0xf]
    %v112 = vld [vmem:[#allocation6 + $0x50] sm:$0xf]
    %v113 = vld [vmem:[#allocation6 + $0x54] sm:$0xf]
    %v114 = vld [vmem:[#allocation6 + $0x58] sm:$0xf]
    %v115 = vld [vmem:[#allocation6 + $0x5c] sm:$0xf]
    %v116 = vld [vmem:[#allocation6 + $0x60] sm:$0xf]
    %v117 = vld [vmem:[#allocation6 + $0x64] sm:$0xf]
    %v118 = vld [vmem:[#allocation6 + $0x68] sm:$0xf]
    %v119 = vld [vmem:[#allocation6 + $0x6c] sm:$0xf]
    %v120 = vld [vmem:[#allocation6 + $0x70] sm:$0xf]
    %v121 = vld [vmem:[#allocation6 + $0x74] sm:$0xf]
    %v122 = vld [vmem:[#allocation6 + $0x78] sm:$0xf]
    %v123 = vld [vmem:[#allocation6 + $0x7c] sm:$0xf]
    %v124 = vld [vmem:[#allocation6 + $0x80] sm:$0xf]
    %v125 = vld [vmem:[#allocation6 + $0x84] sm:$0xf]
    %v126 = vld [vmem:[#allocation6 + $0x88] sm:$0xf]
    %v127 = vld [vmem:[#allocation6 + $0x8c] sm:$0xf]
    %v128 = vld [vmem:[#allocation6 + $0x90] sm:$0xf]
    %v129 = vld [vmem:[#allocation6 + $0x94] sm:$0xf]
    %v130 = vld [vmem:[#allocation6 + $0x98] sm:$0xf]
    %v131 = vld [vmem:[#allocation6 + $0x9c] sm:$0xf]
    %v132 = vld [vmem:[#allocation6 + $0xa0] sm:$0xf]
    %v133 = vld [vmem:[#allocation6 + $0xa4] sm:$0xf]
    %v134 = vld [vmem:[#allocation6 + $0xa8] sm:$0xf]
    %v135 = vld [vmem:[#allocation6 + $0xac] sm:$0xf]
    %v136 = vld [vmem:[#allocation6 + $0xb0] sm:$0xf]
    %v137 = vld [vmem:[#allocation6 + $0xb4] sm:$0xf]
    %v138 = vld [vmem:[#allocation6 + $0xb8] sm:$0xf]
    %v139 = vld [vmem:[#allocation6 + $0xbc] sm:$0xf]
    %v140 = vld [vmem:[#allocation6 + $0xc0] sm:$0xf]
    %v141 = vld [vmem:[#allocation6 + $0xc4] sm:$0xf]
    %v142 = vld [vmem:[#allocation6 + $0xc8] sm:$0xf]
    %v143 = vld [vmem:[#allocation6 + $0xcc] sm:$0xf]
    %v144 = vld [vmem:[#allocation6 + $0xd0] sm:$0xf]
    %v145 = vld [vmem:[#allocation6 + $0xd4] sm:$0xf]
    %v146 = vld [vmem:[#allocation6 + $0xd8] sm:$0xf]
    %v147 = vld [vmem:[#allocation6 + $0xdc] sm:$0xf]
    %v148 = vld [vmem:[#allocation6 + $0xe0] sm:$0xf]
    %v149 = vld [vmem:[#allocation6 + $0xe4] sm:$0xf]
    %v150 = vld [vmem:[#allocation6 + $0xe8] sm:$0xf]
    %v151 = vld [vmem:[#allocation6 + $0xec] sm:$0xf]
    %v152 = vld [vmem:[#allocation6 + $0xf0] sm:$0xf]
    %v153 = vld [vmem:[#allocation6 + $0xf4] sm:$0xf]
    %v154 = vld [vmem:[#allocation6 + $0xf8] sm:$0xf]
    %v155 = vld [vmem:[#allocation6 + $0xfc] sm:$0xf]
    %v158 = vunpack.c.l.b16 %v90
    %v159 = vunpack.c.h.b16 %v90
    %v160 = vunpack.c.l.b16 %v91
    %v161 = vunpack.c.h.b16 %v91
    %v162 = vpack.c.b16 %v158, %v158
    %v163 = vpack.c.b16 %v159, %v159
    %v164 = vpack.c.b16 %v160, %v160
    %v165 = vpack.c.b16 %v161, %v161
    %v234 = vunpack.c.l.b16 %v92
    %v235 = vunpack.c.l.b16 %v93
    %v236 = vunpack.c.l.b16 %v94
    %v237 = vunpack.c.l.b16 %v95
    %v238 = vunpack.c.l.b16 %v96
    %v239 = vunpack.c.l.b16 %v97
    %v240 = vunpack.c.l.b16 %v98
    %v241 = vunpack.c.l.b16 %v99
    %v242 = vunpack.c.l.b16 %v100
    %v243 = vunpack.c.l.b16 %v101
    %v244 = vunpack.c.l.b16 %v102
    %v245 = vunpack.c.l.b16 %v103
    %v246 = vunpack.c.l.b16 %v104
    %v247 = vunpack.c.l.b16 %v105
    %v248 = vunpack.c.l.b16 %v106
    %v249 = vunpack.c.l.b16 %v107
    %v250 = vunpack.c.l.b16 %v108
    %v251 = vunpack.c.l.b16 %v109
    %v252 = vunpack.c.l.b16 %v110
    %v253 = vunpack.c.l.b16 %v111
    %v254 = vunpack.c.l.b16 %v112
    %v255 = vunpack.c.l.b16 %v113
    %v256 = vunpack.c.l.b16 %v114
    %v257 = vunpack.c.l.b16 %v115
    %v258 = vunpack.c.l.b16 %v116
    %v259 = vunpack.c.l.b16 %v117
    %v260 = vunpack.c.l.b16 %v118
    %v261 = vunpack.c.l.b16 %v119
    %v262 = vunpack.c.l.b16 %v120
    %v263 = vunpack.c.l.b16 %v121
    %v264 = vunpack.c.l.b16 %v122
    %v265 = vunpack.c.l.b16 %v123
    %v266 = vunpack.c.l.b16 %v124
    %v267 = vunpack.c.l.b16 %v125
    %v268 = vunpack.c.l.b16 %v126
    %v269 = vunpack.c.l.b16 %v127
    %v270 = vunpack.c.l.b16 %v128
    %v271 = vunpack.c.l.b16 %v129
    %v272 = vunpack.c.l.b16 %v130
    %v273 = vunpack.c.l.b16 %v131
    %v274 = vunpack.c.l.b16 %v132
    %v275 = vunpack.c.l.b16 %v133
    %v276 = vunpack.c.l.b16 %v134
    %v277 = vunpack.c.l.b16 %v135
    %v278 = vunpack.c.l.b16 %v136
    %v279 = vunpack.c.l.b16 %v137
    %v280 = vunpack.c.l.b16 %v138
    %v281 = vunpack.c.l.b16 %v139
    %v282 = vunpack.c.l.b16 %v140
    %v283 = vunpack.c.l.b16 %v141
    %v284 = vunpack.c.l.b16 %v142
    %v285 = vunpack.c.l.b16 %v143
    %v286 = vunpack.c.l.b16 %v144
    %v287 = vunpack.c.l.b16 %v145
    %v288 = vunpack.c.l.b16 %v146
    %v289 = vunpack.c.l.b16 %v147
    %v290 = vunpack.c.l.b16 %v148
    %v291 = vunpack.c.l.b16 %v149
    %v292 = vunpack.c.l.b16 %v150
    %v293 = vunpack.c.l.b16 %v151
    %v294 = vunpack.c.l.b16 %v152
    %v295 = vunpack.c.l.b16 %v153
    %v296 = vunpack.c.l.b16 %v154
    %v297 = vunpack.c.l.b16 %v155
    %v298 = vpack.c.b16 %v235, %v234
    %v299 = vpack.c.b16 %v237, %v236
    %v300 = vpack.c.b16 %v239, %v238
    %v301 = vpack.c.b16 %v241, %v240
    %v302 = vpack.c.b16 %v243, %v242
    %v303 = vpack.c.b16 %v245, %v244
    %v304 = vpack.c.b16 %v247, %v246
    %v305 = vpack.c.b16 %v249, %v248
    %v306 = vpack.c.b16 %v251, %v250
    %v307 = vpack.c.b16 %v253, %v252
    %v308 = vpack.c.b16 %v255, %v254
    %v309 = vpack.c.b16 %v257, %v256
    %v310 = vpack.c.b16 %v259, %v258
    %v311 = vpack.c.b16 %v261, %v260
    %v312 = vpack.c.b16 %v263, %v262
    %v313 = vpack.c.b16 %v265, %v264
    %v314 = vpack.c.b16 %v267, %v266
    %v315 = vpack.c.b16 %v269, %v268
    %v316 = vpack.c.b16 %v271, %v270
    %v317 = vpack.c.b16 %v273, %v272
    %v318 = vpack.c.b16 %v275, %v274
    %v319 = vpack.c.b16 %v277, %v276
    %v320 = vpack.c.b16 %v279, %v278
    %v321 = vpack.c.b16 %v281, %v280
    %v322 = vpack.c.b16 %v283, %v282
    %v323 = vpack.c.b16 %v285, %v284
    %v324 = vpack.c.b16 %v287, %v286
    %v325 = vpack.c.b16 %v289, %v288
    %v326 = vpack.c.b16 %v291, %v290
    %v327 = vpack.c.b16 %v293, %v292
    %v328 = vpack.c.b16 %v295, %v294
    %v329 = vpack.c.b16 %v297, %v296
    %362 = vmatprep.subr.bf16.mxu0 0
    %363 = vmatpush1.bf16.msra.mxu0 %v305
    %364 = vmatprep.subr.bf16.mxu0 0
    %365 = vmatpush1.bf16.msra.mxu0 %v304
    %366 = vmatprep.subr.bf16.mxu0 0
    %367 = vmatpush1.bf16.msra.mxu0 %v303
    %368 = vmatprep.subr.bf16.mxu0 0
    %369 = vmatpush1.bf16.msra.mxu0 %v302
    %370 = vmatprep.subr.bf16.mxu0 0
    %371 = vmatpush1.bf16.msra.mxu0 %v301
    %372 = vmatprep.subr.bf16.mxu0 0
    %373 = vmatpush1.bf16.msra.mxu0 %v300
    %374 = vmatprep.subr.bf16.mxu0 0
    %375 = vmatpush1.bf16.msra.mxu0 %v299
    %376 = vmatprep.subr.bf16.mxu0 0
    %377 = vmatpush1.bf16.msra.mxu0 %v298
    %378 = vmatprep.subr.bf16.mxu0 0
    %379 = vmatpush2.bf16.msra.mxu0 %v313
    %380 = vmatprep.subr.bf16.mxu0 0
    %381 = vmatpush2.bf16.msra.mxu0 %v312
    %382 = vmatprep.subr.bf16.mxu0 0
    %383 = vmatpush2.bf16.msra.mxu0 %v311
    %384 = vmatprep.subr.bf16.mxu0 0
    %385 = vmatpush2.bf16.msra.mxu0 %v310
    %386 = vmatprep.subr.bf16.mxu0 0
    %387 = vmatpush2.bf16.msra.mxu0 %v309
    %388 = vmatprep.subr.bf16.mxu0 0
    %389 = vmatpush2.bf16.msra.mxu0 %v308
    %390 = vmatprep.subr.bf16.mxu0 0
    %391 = vmatpush2.bf16.msra.mxu0 %v307
    %392 = vmatprep.subr.bf16.mxu0 0
    %393 = vmatpush2.bf16.msra.mxu0 %v306
    %394 = vmatprep.mubr.bf16.mxu0 %v163
    %395 = vmatmul.mubr.bf16.gmra.mxu0 %v162
    %v396 = vpop.f32.mrf.mxu0
    %v397 = vadd.f32 0.0, %v396
    %v398 = vpop.f32.mrf.mxu0
    %v399 = vpop.f32.mrf.mxu0
    %v400 = vpop.f32.mrf.mxu0
    %401 = vdwg.mxu0
    %402 = vmatprep.subr.bf16.mxu0 0
    %403 = vmatpush1.bf16.msra.mxu0 %v321
    %404 = vmatprep.subr.bf16.mxu0 0
    %405 = vmatpush1.bf16.msra.mxu0 %v320
    %406 = vmatprep.subr.bf16.mxu0 0
    %407 = vmatpush1.bf16.msra.mxu0 %v319
    %408 = vmatprep.subr.bf16.mxu0 0
    %409 = vmatpush1.bf16.msra.mxu0 %v318
    %410 = vmatprep.subr.bf16.mxu0 0
    %411 = vmatpush1.bf16.msra.mxu0 %v317
    %412 = vmatprep.subr.bf16.mxu0 0
    %413 = vmatpush1.bf16.msra.mxu0 %v316
    %414 = vmatprep.subr.bf16.mxu0 0
    %415 = vmatpush1.bf16.msra.mxu0 %v315
    %416 = vmatprep.subr.bf16.mxu0 0
    %417 = vmatpush1.bf16.msra.mxu0 %v314
    %418 = vmatprep.subr.bf16.mxu0 0
    %419 = vmatpush2.bf16.msra.mxu0 %v329
    %420 = vmatprep.subr.bf16.mxu0 0
    %421 = vmatpush2.bf16.msra.mxu0 %v328
    %422 = vmatprep.subr.bf16.mxu0 0
    %423 = vmatpush2.bf16.msra.mxu0 %v327
    %424 = vmatprep.subr.bf16.mxu0 0
    %425 = vmatpush2.bf16.msra.mxu0 %v326
    %426 = vmatprep.subr.bf16.mxu0 0
    %427 = vmatpush2.bf16.msra.mxu0 %v325
    %428 = vmatprep.subr.bf16.mxu0 0
    %429 = vmatpush2.bf16.msra.mxu0 %v324
    %430 = vmatprep.subr.bf16.mxu0 0
    %431 = vmatpush2.bf16.msra.mxu0 %v323
    %432 = vmatprep.subr.bf16.mxu0 0
    %433 = vmatpush2.bf16.msra.mxu0 %v322
    %434 = vmatprep.mubr.bf16.mxu0 %v165
    %435 = vmatmul.mubr.bf16.gmra.mxu0 %v164
    %v436 = vpop.f32.mrf.mxu0
    %v437 = vadd.f32 %v397, %v436
    %v438 = vpop.f32.mrf.mxu0
    %v439 = vpop.f32.mrf.mxu0
    %v440 = vpop.f32.mrf.mxu0
    %441 = vdwg.mxu0
    %v442 = vadd.f32 %v89, %v437
    %443 = vst [vmem:[#allocation2] sm:$0xff] %v442
    // Predicated region
    $region50: #{tpu_custom_call.1} parent=1 // pred_check
      %p444 = pneg %p84
    $region51: #{tpu_custom_call.1} parent=1 // pred_check_branch
      %446 = sbr.rel (%p444) target = $region53
    $region52: #{tpu_custom_call.1} parent=1 // pred_region
      %v447 = vld [vmem:[#allocation2] sm:$0xff]
      %v448 = vld [vmem:[%s2] sm:$0x1]
      %v450 = vlaneseq
      %v451 = vshrl.u32 %v450, 7
      %v452 = vsub.s32 0, %v451
      %v453 = vrot.slane %v448, %v452
      %v455 = vadd.f32 %v447, %v453
      %v456 = vmax.f32 %v455, 0.0
      %457 = vst [vmem:[#allocation12] sm:$0xff] %v456
      %v458 = vpack.c.bf16 %v456, %v456
      %v459 = vld [vmem:[#allocation8] sm:$0xf]
      %v460 = vld [vmem:[#allocation8 + $0x4] sm:$0xf]
      %v461 = vld [vmem:[#allocation8 + $0x8] sm:$0xf]
      %v462 = vld [vmem:[#allocation8 + $0xc] sm:$0xf]
      %v463 = vld [vmem:[#allocation8 + $0x10] sm:$0xf]
      %v464 = vld [vmem:[#allocation8 + $0x14] sm:$0xf]
      %v465 = vld [vmem:[#allocation8 + $0x18] sm:$0xf]
      %v466 = vld [vmem:[#allocation8 + $0x1c] sm:$0xf]
      %v467 = vld [vmem:[#allocation8 + $0x20] sm:$0xf]
      %v468 = vld [vmem:[#allocation8 + $0x24] sm:$0xf]
      %v469 = vld [vmem:[#allocation8 + $0x28] sm:$0xf]
      %v470 = vld [vmem:[#allocation8 + $0x2c] sm:$0xf]
      %v471 = vld [vmem:[#allocation8 + $0x30] sm:$0xf]
      %v472 = vld [vmem:[#allocation8 + $0x34] sm:$0xf]
      %v473 = vld [vmem:[#allocation8 + $0x38] sm:$0xf]
      %v474 = vld [vmem:[#allocation8 + $0x3c] sm:$0xf]
      %v475 = vld [vmem:[%s4] sm:$0x1]
      %v477 = vlaneseq
      %v478 = vshrl.u32 %v477, 7
      %v479 = vsub.s32 0, %v478
      %v480 = vrot.slane %v475, %v479
      %v498 = vunpack.c.l.b16 %v459
      %v499 = vunpack.c.l.b16 %v460
      %v500 = vunpack.c.l.b16 %v461
      %v501 = vunpack.c.l.b16 %v462
      %v502 = vunpack.c.l.b16 %v463
      %v503 = vunpack.c.l.b16 %v464
      %v504 = vunpack.c.l.b16 %v465
      %v505 = vunpack.c.l.b16 %v466
      %v506 = vunpack.c.l.b16 %v467
      %v507 = vunpack.c.l.b16 %v468
      %v508 = vunpack.c.l.b16 %v469
      %v509 = vunpack.c.l.b16 %v470
      %v510 = vunpack.c.l.b16 %v471
      %v511 = vunpack.c.l.b16 %v472
      %v512 = vunpack.c.l.b16 %v473
      %v513 = vunpack.c.l.b16 %v474
      %v514 = vpack.c.b16 %v499, %v498
      %v515 = vpack.c.b16 %v501, %v500
      %v516 = vpack.c.b16 %v503, %v502
      %v517 = vpack.c.b16 %v505, %v504
      %v518 = vpack.c.b16 %v507, %v506
      %v519 = vpack.c.b16 %v509, %v508
      %v520 = vpack.c.b16 %v511, %v510
      %v521 = vpack.c.b16 %v513, %v512
      %530 = vmatprep.subr.bf16.mxu0 0
      %531 = vmatpush1.bf16.msra.mxu0 %v521
      %532 = vmatprep.subr.bf16.mxu0 0
      %533 = vmatpush1.bf16.msra.mxu0 %v520
      %534 = vmatprep.subr.bf16.mxu0 0
      %535 = vmatpush1.bf16.msra.mxu0 %v519
      %536 = vmatprep.subr.bf16.mxu0 0
      %537 = vmatpush1.bf16.msra.mxu0 %v518
      %538 = vmatprep.subr.bf16.mxu0 0
      %539 = vmatpush1.bf16.msra.mxu0 %v517
      %540 = vmatprep.subr.bf16.mxu0 0
      %541 = vmatpush1.bf16.msra.mxu0 %v516
      %542 = vmatprep.subr.bf16.mxu0 0
      %543 = vmatpush1.bf16.msra.mxu0 %v515
      %544 = vmatprep.subr.bf16.mxu0 0
      %545 = vmatpush1.bf16.msra.mxu0 %v514
      %546 = vmatprep.subr.bf16.mxu0 0
      %547 = vmatpush2.bf16.msra.mxu0 0
      %548 = vmatprep.subr.bf16.mxu0 0
      %549 = vmatpush2.bf16.msra.mxu0 0
      %550 = vmatprep.subr.bf16.mxu0 0
      %551 = vmatpush2.bf16.msra.mxu0 0
      %552 = vmatprep.subr.bf16.mxu0 0
      %553 = vmatpush2.bf16.msra.mxu0 0
      %554 = vmatprep.subr.bf16.mxu0 0
      %555 = vmatpush2.bf16.msra.mxu0 0
      %556 = vmatprep.subr.bf16.mxu0 0
      %557 = vmatpush2.bf16.msra.mxu0 0
      %558 = vmatprep.subr.bf16.mxu0 0
      %559 = vmatpush2.bf16.msra.mxu0 0
      %560 = vmatprep.subr.bf16.mxu0 0
      %561 = vmatpush2.bf16.msra.mxu0 0
      %562 = vmatprep.mubr.bf16.mxu0 0
      %563 = vmatmul.mubr.bf16.gmra.mxu0 %v458
      %v564 = vpop.f32.mrf.mxu0
      %v565 = vadd.f32 %v480, %v564
      %v566 = vpop.f32.mrf.mxu0
      %v567 = vpop.f32.mrf.mxu0
      %v568 = vpop.f32.mrf.mxu0
      %569 = vdwg.mxu0
      %v570 = vmax.f32 %v565, 0.0
      %v571 = vpack.c.bf16 %v570, %v570
      %v572 = vld [vmem:[#allocation9] sm:$0xff]
      %v573 = vld [vmem:[#allocation9 + $0x8] sm:$0xff]
      %v574 = vld [vmem:[#allocation9 + $0x10] sm:$0xff]
      %v575 = vld [vmem:[#allocation9 + $0x18] sm:$0xff]
      %v576 = vld [vmem:[#allocation9 + $0x20] sm:$0xff]
      %v577 = vld [vmem:[#allocation9 + $0x28] sm:$0xff]
      %v578 = vld [vmem:[#allocation9 + $0x30] sm:$0xff]
      %v579 = vld [vmem:[#allocation9 + $0x38] sm:$0xff]
      %v580 = vld [vmem:[#allocation9 + $0x40] sm:$0xff]
      %v581 = vld [vmem:[#allocation9 + $0x48] sm:$0xff]
      %v582 = vld [vmem:[#allocation9 + $0x50] sm:$0xff]
      %v583 = vld [vmem:[#allocation9 + $0x58] sm:$0xff]
      %v584 = vld [vmem:[#allocation9 + $0x60] sm:$0xff]
      %v585 = vld [vmem:[#allocation9 + $0x68] sm:$0xff]
      %v586 = vld [vmem:[#allocation9 + $0x70] sm:$0xff]
      %v587 = vld [vmem:[#allocation9 + $0x78] sm:$0xff]
      %v588 = vld [vmem:[%s6] sm:$0x3]
      %v590 = vlaneseq
      %v591 = vshrl.u32 %v590, 7
      %v592 = vsub.s32 0, %v591
      %v593 = vrot.slane %v588, %v592
      %v594 = vlaneseq
      %v595 = vshrl.u32 %v594, 7
      %v596 = vsub.s32 1, %v595
      %v597 = vrot.slane %v588, %v596
      %v616 = vunpack.c.l.b16 %v572
      %v617 = vunpack.c.h.b16 %v572
      %v618 = vunpack.c.l.b16 %v573
      %v619 = vunpack.c.h.b16 %v573
      %v620 = vunpack.c.l.b16 %v574
      %v621 = vunpack.c.h.b16 %v574
      %v622 = vunpack.c.l.b16 %v575
      %v623 = vunpack.c.h.b16 %v575
      %v624 = vunpack.c.l.b16 %v576
      %v625 = vunpack.c.h.b16 %v576
      %v626 = vunpack.c.l.b16 %v577
      %v627 = vunpack.c.h.b16 %v577
      %v628 = vunpack.c.l.b16 %v578
      %v629 = vunpack.c.h.b16 %v578
      %v630 = vunpack.c.l.b16 %v579
      %v631 = vunpack.c.h.b16 %v579
      %v632 = vunpack.c.l.b16 %v580
      %v633 = vunpack.c.h.b16 %v580
      %v634 = vunpack.c.l.b16 %v581
      %v635 = vunpack.c.h.b16 %v581
      %v636 = vunpack.c.l.b16 %v582
      %v637 = vunpack.c.h.b16 %v582
      %v638 = vunpack.c.l.b16 %v583
      %v639 = vunpack.c.h.b16 %v583
      %v640 = vunpack.c.l.b16 %v584
      %v641 = vunpack.c.h.b16 %v584
      %v642 = vunpack.c.l.b16 %v585
      %v643 = vunpack.c.h.b16 %v585
      %v644 = vunpack.c.l.b16 %v586
      %v645 = vunpack.c.h.b16 %v586
      %v646 = vunpack.c.l.b16 %v587
      %v647 = vunpack.c.h.b16 %v587
      %v648 = vpack.c.b16 %v618, %v616
      %v649 = vpack.c.b16 %v619, %v617
      %v650 = vpack.c.b16 %v622, %v620
      %v651 = vpack.c.b16 %v623, %v621
      %v652 = vpack.c.b16 %v626, %v624
      %v653 = vpack.c.b16 %v627, %v625
      %v654 = vpack.c.b16 %v630, %v628
      %v655 = vpack.c.b16 %v631, %v629
      %v656 = vpack.c.b16 %v634, %v632
      %v657 = vpack.c.b16 %v635, %v633
      %v658 = vpack.c.b16 %v638, %v636
      %v659 = vpack.c.b16 %v639, %v637
      %v660 = vpack.c.b16 %v642, %v640
      %v661 = vpack.c.b16 %v643, %v641
      %v662 = vpack.c.b16 %v646, %v644
      %v663 = vpack.c.b16 %v647, %v645
      %680 = vmatprep.subr.bf16.mxu0 %v663
      %681 = vmatpush1.bf16.msra.mxu0 %v662
      %682 = vmatprep.subr.bf16.mxu0 %v661
      %683 = vmatpush1.bf16.msra.mxu0 %v660
      %684 = vmatprep.subr.bf16.mxu0 %v659
      %685 = vmatpush1.bf16.msra.mxu0 %v658
      %686 = vmatprep.subr.bf16.mxu0 %v657
      %687 = vmatpush1.bf16.msra.mxu0 %v656
      %688 = vmatprep.subr.bf16.mxu0 %v655
      %689 = vmatpush1.bf16.msra.mxu0 %v654
      %690 = vmatprep.subr.bf16.mxu0 %v653
      %691 = vmatpush1.bf16.msra.mxu0 %v652
      %692 = vmatprep.subr.bf16.mxu0 %v651
      %693 = vmatpush1.bf16.msra.mxu0 %v650
      %694 = vmatprep.subr.bf16.mxu0 %v649
      %695 = vmatpush1.bf16.msra.mxu0 %v648
      %696 = vmatprep.subr.bf16.mxu0 0
      %697 = vmatpush2.bf16.msra.mxu0 0
      %698 = vmatprep.subr.bf16.mxu0 0
      %699 = vmatpush2.bf16.msra.mxu0 0
      %700 = vmatprep.subr.bf16.mxu0 0
      %701 = vmatpush2.bf16.msra.mxu0 0
      %702 = vmatprep.subr.bf16.mxu0 0
      %703 = vmatpush2.bf16.msra.mxu0 0
      %704 = vmatprep.subr.bf16.mxu0 0
      %705 = vmatpush2.bf16.msra.mxu0 0
      %706 = vmatprep.subr.bf16.mxu0 0
      %707 = vmatpush2.bf16.msra.mxu0 0
      %708 = vmatprep.subr.bf16.mxu0 0
      %709 = vmatpush2.bf16.msra.mxu0 0
      %710 = vmatprep.subr.bf16.mxu0 0
      %711 = vmatpush2.bf16.msra.mxu0 0
      %712 = vmatprep.mubr.bf16.mxu0 0
      %713 = vmatmul.mubr.bf16.gmra.mxu0 %v571
      %v714 = vpop.f32.mrf.mxu0
      %v715 = vadd.f32 %v593, %v714
      %v716 = vpop.f32.mrf.mxu0
      %v717 = vadd.f32 %v597, %v716
      %v718 = vpop.f32.mrf.mxu0
      %v719 = vpop.f32.mrf.mxu0
      %720 = vdwg.mxu0
      %721 = vst [vmem:[#allocation11] sm:$0xff] %v715
      %722 = vst [vmem:[#allocation11 + $0x8] sm:$0xff] %v717
    $region53: #{tpu_custom_call.1} parent=1 // pred_fallthru
      _
    // Predicated region
    $region54: #{tpu_custom_call.1} parent=1 // pred_check
      _
    $region55: #{tpu_custom_call.1} parent=1 // pred_check_branch
      %724 = sbr.rel (0) target = $region57
    $region56: #{tpu_custom_call.1} parent=1 // pred_region
      %s726 = ssub.s32 256, 256
      %727 = vsyncadd [#allocation5], %s726
      %s729 = sshll.u32 [#allocation11], 4
      %s730 = int_to_ptr.vmem [resolvable:$true] %s729
      %732 = dma.vmem_to_hbm [thread:$0]  %s730, 256, %s7, [#allocation5]
    $region57: #{tpu_custom_call.1} parent=1 // pred_fallthru
      _
    // Predicated region
    $region58: #{tpu_custom_call.1} parent=1 // pred_check
      _
    $region59: #{tpu_custom_call.1} parent=1 // pred_check_branch
      %734 = sbr.rel (0) target = $region61
    $region60: #{tpu_custom_call.1} parent=1 // pred_region
      %s736 = ssub.s32 128, 128
      %737 = vsyncadd [#allocation13], %s736
      %s739 = sshll.u32 [#allocation12], 4
      %s740 = int_to_ptr.vmem [resolvable:$true] %s739
      %742 = dma.vmem_to_hbm [thread:$0]  %s740, 128, %s8, [#allocation13]
    $region61: #{tpu_custom_call.1} parent=1 // pred_fallthru
      _
    // Predicated region
    $region62: #{tpu_custom_call.1} parent=1 // pred_check
      _
    $region63: #{tpu_custom_call.1} parent=1 // pred_check_branch
      %744 = sbr.rel (0) target = $region65
    $region64: #{tpu_custom_call.1} parent=1 // pred_region
      %745 = dma.done [#allocation5], 256
    $region65: #{tpu_custom_call.1} parent=1 // pred_fallthru
      _
    // Predicated region
    $region66: #{tpu_custom_call.1} parent=1 // pred_check
      _
    $region67: #{tpu_custom_call.1} parent=1 // pred_check_branch
      %747 = sbr.rel (0) target = $region69
    $region68: #{tpu_custom_call.1} parent=1 // pred_region
      %748 = dma.done [#allocation13], 128
    $region69: #{tpu_custom_call.1} parent=1 // pred_fallthru
      _
    %749 = vsyncpa [#allocation4], 1
    %750 = vsyncpa [#allocation7], 1
    %751 = vsyncpa [#allocation10], 1
    %752 = vsyncpa [#allocation5], 1
    %753 = vsyncpa [#allocation13], 1

</llo_original>
